<compile_context>
chip_gen: v7x
topology: tpu7x:2x2x1
jax: 0.10.0
libtpu: 0.0.40
codegen_flags: <defaults>
</compile_context>

<pallas_src>
import jax
import jax.numpy as jnp
from jax.experimental import pallas as pl
from jax.experimental.pallas import tpu as pltpu


def enhanced_attention_kernel(
    driver_ref, vehicle_ref, topo_ref,
    wd_ref, bd_ref, wv_ref, bv_ref, wt_ref, bt_ref, wa_ref, ba_ref,
    attn_ref, logits_ref,
):
    # Running product: one [TILE_M, attn_dim] f32 accumulator live at a time.
    acc = jnp.tanh(
        jnp.dot(driver_ref[...], wd_ref[...], preferred_element_type=jnp.float32)
        + bd_ref[...]
    )
    acc = acc * jax.nn.sigmoid(
        jnp.dot(vehicle_ref[...], wv_ref[...], preferred_element_type=jnp.float32)
        + bv_ref[...]
    )
    acc = acc * jnp.maximum(
        jnp.dot(topo_ref[...], wt_ref[...], preferred_element_type=jnp.float32)
        + bt_ref[...],
        0.0,
    )

    # attention_fc with out_features=1: VPU multiply + XLU lane reduction
    # instead of an N=1 MXU matmul. wa_ref is the transposed weight row
    # [1, attn_dim]; ba_ref is [1, 1].
    logits = jnp.sum(acc * wa_ref[...], axis=1, keepdims=True) + ba_ref[...]

    # softmax over dim=1 (size 1) -> identically 1.0; exact form kept.
    m = jnp.max(logits, axis=1, keepdims=True)
    e = jnp.exp(logits - m)
    attn = e / jnp.sum(e, axis=1, keepdims=True)

    # Lane-dense stores (last dim = 128 -> unmasked vst); wrapper slices [:, :1].
    attn_ref[...] = jnp.broadcast_to(attn, attn_ref.shape).astype(attn_ref.dtype)
    logits_ref[...] = jnp.broadcast_to(logits, logits_ref.shape).astype(logits_ref.dtype)


def enhanced_attention(driver, vehicle, topo, params, *, tile_m=128,
                       return_logits=False):
    B, driver_dim = driver.shape
    vehicle_dim = vehicle.shape[1]
    topo_dim = topo.shape[1]
    attn_dim = params["wd"].shape[1]

    # Batch tiling: TILE_M=128 fills the v5e MXU rows (use 256 on v6e/v7x).
    tile_m = min(tile_m, B)
    grid_m = pl.cdiv(B, tile_m)
    b_pad = grid_m * tile_m
    if b_pad != B:
        pad = ((0, b_pad - B), (0, 0))
        driver = jnp.pad(driver, pad)
        vehicle = jnp.pad(vehicle, pad)
        topo = jnp.pad(topo, pad)

    # bf16 MXU inputs (halves weight/activation DMA bytes); f32 accumulation,
    # f32 biases and elementwise math (v5e has no bf16 VPU/EUP path).
    driver_bf = driver.astype(jnp.bfloat16)
    vehicle_bf = vehicle.astype(jnp.bfloat16)
    topo_bf = topo.astype(jnp.bfloat16)
    wd = params["wd"].astype(jnp.bfloat16)
    wv = params["wv"].astype(jnp.bfloat16)
    wt = params["wt"].astype(jnp.bfloat16)
    bd, bv, bt = params["bd"], params["bv"], params["bt"]
    wa_row = params["wa"].T            # [1, attn_dim], f32 (VPU path)
    ba = params["ba"]                  # [1, 1], f32

    def batch_spec(d):
        return pl.BlockSpec((tile_m, d), lambda i: (i, 0))

    def resident(shape):
        return pl.BlockSpec(shape, lambda i: (0, 0))

    in_specs = [
        batch_spec(driver_dim), batch_spec(vehicle_dim), batch_spec(topo_dim),
        resident((driver_dim, attn_dim)), resident((1, attn_dim)),
        resident((vehicle_dim, attn_dim)), resident((1, attn_dim)),
        resident((topo_dim, attn_dim)), resident((1, attn_dim)),
        resident((1, attn_dim)),   # wa_row
        resident((1, 1)),          # ba
    ]
    out_specs = (batch_spec(128), batch_spec(128))
    out_shape = (
        jax.ShapeDtypeStruct((b_pad, 128), jnp.float32),
        jax.ShapeDtypeStruct((b_pad, 128), jnp.float32),
    )

    attn_slab, logits_slab = pl.pallas_call(
        enhanced_attention_kernel,
        out_shape=out_shape,
        grid=(grid_m,),
        in_specs=in_specs,
        out_specs=out_specs,
        compiler_params=pltpu.CompilerParams(
            dimension_semantics=("parallel",),
            vmem_limit_bytes=32 * 1024 * 1024,
        ),
    )(driver_bf, vehicle_bf, topo_bf, wd, bd, wv, bv, wt, bt, wa_row, ba)

    attention = attn_slab[:B, :1]
    if return_logits:
        return attention, logits_slab[:B, :1]
    return attention


def init_params(key, driver_dim=256, vehicle_dim=256, topo_dim=128, attn_dim=256):
    ks = jax.random.split(key, 8)

    def lin(kw, kb, fan_in, fan_out):
        bound = 1.0 / jnp.sqrt(fan_in)
        w = jax.random.uniform(kw, (fan_in, fan_out), jnp.float32, -bound, bound)
        b = jax.random.uniform(kb, (1, fan_out), jnp.float32, -bound, bound)
        return w, b

    wd, bd = lin(ks[0], ks[1], driver_dim, attn_dim)
    wv, bv = lin(ks[2], ks[3], vehicle_dim, attn_dim)
    wt, bt = lin(ks[4], ks[5], topo_dim, attn_dim)
    wa, ba = lin(ks[6], ks[7], attn_dim, 1)
    return dict(wd=wd, bd=bd, wv=wv, bv=bv, wt=wt, bt=bt, wa=wa, ba=ba)


def reference(driver, vehicle, topo, p):
    # Faithful f32 port of the PyTorch module.
    d = jnp.tanh(driver @ p["wd"] + p["bd"])
    v = jax.nn.sigmoid(vehicle @ p["wv"] + p["bv"])
    t = jnp.maximum(topo @ p["wt"] + p["bt"], 0.0)
    combined = d * v * t
    logits = combined @ p["wa"] + p["ba"]
    return jax.nn.softmax(logits, axis=1)


def reference_logits_bf16(driver, vehicle, topo, p):
    # Mirrors the kernel's dtype strategy so the projection math can be
    # checked (the singleton softmax output is constant and hides errors).
    f32 = jnp.float32
    d = jnp.tanh(jnp.dot(driver.astype(jnp.bfloat16), p["wd"].astype(jnp.bfloat16),
                         preferred_element_type=f32) + p["bd"])
    v = jax.nn.sigmoid(jnp.dot(vehicle.astype(jnp.bfloat16), p["wv"].astype(jnp.bfloat16),
                               preferred_element_type=f32) + p["bv"])
    t = jnp.maximum(jnp.dot(topo.astype(jnp.bfloat16), p["wt"].astype(jnp.bfloat16),
                            preferred_element_type=f32) + p["bt"], 0.0)
    combined = d * v * t
    return jnp.sum(combined * p["wa"].T, axis=1, keepdims=True) + p["ba"]


if __name__ == "__main__":
    key = jax.random.PRNGKey(0)
    k_d, k_v, k_t, k_p = jax.random.split(key, 4)

    # Batch large enough to exercise the tiled grid (2 steps at TILE_M=128)
    # while staying tiny (< 1 MB of activations).
    batch = 256
    driver_dim, vehicle_dim, topo_dim, attn_dim = 256, 256, 128, 256

    driver = jax.random.normal(k_d, (batch, driver_dim), jnp.float32)
    vehicle = jax.random.normal(k_v, (batch, vehicle_dim), jnp.float32)
    topo = jax.random.normal(k_t, (batch, topo_dim), jnp.float32)

    params = init_params(k_p, driver_dim, vehicle_dim, topo_dim, attn_dim)

    attn, logits = enhanced_attention(driver, vehicle, topo, params,
                                      tile_m=128, return_logits=True)
    attn, logits = jax.block_until_ready((attn, logits))

    ref_attn = reference(driver, vehicle, topo, params)
    ref_logits = reference_logits_bf16(driver, vehicle, topo, params)

    assert attn.shape == (batch, 1), attn.shape
    # Module semantics: softmax over a size-1 axis is identically 1.0.
    assert jnp.allclose(attn, ref_attn, atol=1e-5), (attn[:4], ref_attn[:4])
    # Validate the projection / attention_fc math, which the constant softmax
    # output would otherwise hide.
    assert jnp.allclose(logits, ref_logits, atol=5e-3, rtol=5e-3), float(
        jnp.max(jnp.abs(logits - ref_logits)))

    print("KERNEL_OK")
</pallas_src>

<mosaic_0001>
module attributes {stable_mosaic.version = 11 : i64} {
  func.func @enhanced_attention_kernel(%arg0: i32, %arg1: memref<128x256xbf16, #tpu.memory_space<vmem>>, %arg2: memref<128x256xbf16, #tpu.memory_space<vmem>>, %arg3: memref<128x128xbf16, #tpu.memory_space<vmem>>, %arg4: memref<256x256xbf16, #tpu.memory_space<vmem>>, %arg5: memref<1x256xf32, #tpu.memory_space<vmem>>, %arg6: memref<256x256xbf16, #tpu.memory_space<vmem>>, %arg7: memref<1x256xf32, #tpu.memory_space<vmem>>, %arg8: memref<128x256xbf16, #tpu.memory_space<vmem>>, %arg9: memref<1x256xf32, #tpu.memory_space<vmem>>, %arg10: memref<1x256xf32, #tpu.memory_space<vmem>>, %arg11: memref<1x1xf32, #tpu.memory_space<vmem>>, %arg12: memref<128x128xf32, #tpu.memory_space<vmem>>, %arg13: memref<128x128xf32, #tpu.memory_space<vmem>>) attributes {dimension_semantics = [#tpu.dimension_semantics<parallel>], iteration_bounds = array<i64: 2>, scalar_prefetch = 0 : i64, scratch_operands = 0 : i64, tpu.core_type = #tpu.core_type<tc>, window_params = [{transform_indices = @transform_0, window_bounds = array<i64: 128, 256>}, {transform_indices = @transform_1, window_bounds = array<i64: 128, 256>}, {transform_indices = @transform_2, window_bounds = array<i64: 128, 128>}, {pipeline_mode = #tpu.pipeline_mode<synchronous>, transform_indices = @transform_3, window_bounds = array<i64: 256, 256>}, {pipeline_mode = #tpu.pipeline_mode<synchronous>, transform_indices = @transform_4, window_bounds = array<i64: 1, 256>}, {pipeline_mode = #tpu.pipeline_mode<synchronous>, transform_indices = @transform_5, window_bounds = array<i64: 256, 256>}, {pipeline_mode = #tpu.pipeline_mode<synchronous>, transform_indices = @transform_6, window_bounds = array<i64: 1, 256>}, {pipeline_mode = #tpu.pipeline_mode<synchronous>, transform_indices = @transform_7, window_bounds = array<i64: 128, 256>}, {pipeline_mode = #tpu.pipeline_mode<synchronous>, transform_indices = @transform_8, window_bounds = array<i64: 1, 256>}, {pipeline_mode = #tpu.pipeline_mode<synchronous>, transform_indices = @transform_9, window_bounds = array<i64: 1, 256>}, {pipeline_mode = #tpu.pipeline_mode<synchronous>, transform_indices = @transform_10, window_bounds = array<i64: 1, 1>}, {transform_indices = @transform_11, window_bounds = array<i64: 128, 128>}, {transform_indices = @transform_12, window_bounds = array<i64: 128, 128>}]} {
    %c0 = arith.constant 0 : index
    %c0_0 = arith.constant 0 : index
    %0 = vector.load %arg1[%c0, %c0_0] : memref<128x256xbf16, #tpu.memory_space<vmem>>, vector<128x256xbf16>
    %c0_1 = arith.constant 0 : index
    %c0_2 = arith.constant 0 : index
    %1 = vector.load %arg4[%c0_1, %c0_2] : memref<256x256xbf16, #tpu.memory_space<vmem>>, vector<256x256xbf16>
    %cst = arith.constant dense<0.000000e+00> : vector<128x256xf32>
    %2 = tpu.matmul %0, %1, %cst {dimension_numbers = #tpu.dot_dimension_numbers<[1], [0], [0], [1], [0, 0, 1, 1], [], []>} : vector<128x256xbf16>, vector<256x256xbf16>, vector<128x256xf32> -> vector<128x256xf32>
    %c0_3 = arith.constant 0 : index
    %c0_4 = arith.constant 0 : index
    %3 = vector.load %arg5[%c0_3, %c0_4] : memref<1x256xf32, #tpu.memory_space<vmem>>, vector<1x256xf32>
    %4 = vector.broadcast %3 : vector<1x256xf32> to vector<128x256xf32>
    %5 = arith.addf %2, %4 : vector<128x256xf32>
    %6 = math.tanh %5 : vector<128x256xf32>
    %c0_5 = arith.constant 0 : index
    %c0_6 = arith.constant 0 : index
    %7 = vector.load %arg2[%c0_5, %c0_6] : memref<128x256xbf16, #tpu.memory_space<vmem>>, vector<128x256xbf16>
    %c0_7 = arith.constant 0 : index
    %c0_8 = arith.constant 0 : index
    %8 = vector.load %arg6[%c0_7, %c0_8] : memref<256x256xbf16, #tpu.memory_space<vmem>>, vector<256x256xbf16>
    %cst_9 = arith.constant dense<0.000000e+00> : vector<128x256xf32>
    %9 = tpu.matmul %7, %8, %cst_9 {dimension_numbers = #tpu.dot_dimension_numbers<[1], [0], [0], [1], [0, 0, 1, 1], [], []>} : vector<128x256xbf16>, vector<256x256xbf16>, vector<128x256xf32> -> vector<128x256xf32>
    %c0_10 = arith.constant 0 : index
    %c0_11 = arith.constant 0 : index
    %10 = vector.load %arg7[%c0_10, %c0_11] : memref<1x256xf32, #tpu.memory_space<vmem>>, vector<1x256xf32>
    %11 = vector.broadcast %10 : vector<1x256xf32> to vector<128x256xf32>
    %12 = arith.addf %9, %11 : vector<128x256xf32>
    %13 = arith.negf %12 : vector<128x256xf32>
    %14 = math.exp %13 : vector<128x256xf32>
    %cst_12 = arith.constant 1.000000e+00 : f32
    %15 = vector.broadcast %cst_12 : f32 to vector<128x256xf32>
    %16 = arith.addf %15, %14 : vector<128x256xf32>
    %17 = arith.divf %15, %16 : vector<128x256xf32>
    %18 = arith.mulf %6, %17 : vector<128x256xf32>
    %c0_13 = arith.constant 0 : index
    %c0_14 = arith.constant 0 : index
    %19 = vector.load %arg3[%c0_13, %c0_14] : memref<128x128xbf16, #tpu.memory_space<vmem>>, vector<128x128xbf16>
    %c0_15 = arith.constant 0 : index
    %c0_16 = arith.constant 0 : index
    %20 = vector.load %arg8[%c0_15, %c0_16] : memref<128x256xbf16, #tpu.memory_space<vmem>>, vector<128x256xbf16>
    %cst_17 = arith.constant dense<0.000000e+00> : vector<128x256xf32>
    %21 = tpu.matmul %19, %20, %cst_17 {dimension_numbers = #tpu.dot_dimension_numbers<[1], [0], [0], [1], [0, 0, 1, 1], [], []>} : vector<128x128xbf16>, vector<128x256xbf16>, vector<128x256xf32> -> vector<128x256xf32>
    %c0_18 = arith.constant 0 : index
    %c0_19 = arith.constant 0 : index
    %22 = vector.load %arg9[%c0_18, %c0_19] : memref<1x256xf32, #tpu.memory_space<vmem>>, vector<1x256xf32>
    %23 = vector.broadcast %22 : vector<1x256xf32> to vector<128x256xf32>
    %24 = arith.addf %21, %23 : vector<128x256xf32>
    %cst_20 = arith.constant 0.000000e+00 : f32
    %25 = vector.broadcast %cst_20 : f32 to vector<128x256xf32>
    %26 = arith.maximumf %24, %25 : vector<128x256xf32>
    %27 = arith.mulf %18, %26 : vector<128x256xf32>
    %c0_21 = arith.constant 0 : index
    %c0_22 = arith.constant 0 : index
    %28 = vector.load %arg10[%c0_21, %c0_22] : memref<1x256xf32, #tpu.memory_space<vmem>>, vector<1x256xf32>
    %29 = vector.broadcast %28 : vector<1x256xf32> to vector<128x256xf32>
    %30 = arith.mulf %27, %29 : vector<128x256xf32>
    %cst_23 = arith.constant dense<0.000000e+00> : vector<128xf32>
    %31 = vector.multi_reduction <add>, %30, %cst_23 [1] : vector<128x256xf32> to vector<128xf32>
    %32 = vector.shape_cast %31 : vector<128xf32> to vector<128x1xf32>
    %c0_24 = arith.constant 0 : index
    %c0_25 = arith.constant 0 : index
    %33 = vector.load %arg11[%c0_24, %c0_25] : memref<1x1xf32, #tpu.memory_space<vmem>>, vector<1x1xf32>
    %34 = vector.broadcast %33 : vector<1x1xf32> to vector<128x1xf32>
    %35 = arith.addf %32, %34 : vector<128x1xf32>
    %cst_26 = arith.constant dense<0xFF800000> : vector<128xf32>
    %36 = vector.multi_reduction <maximumf>, %35, %cst_26 [1] : vector<128x1xf32> to vector<128xf32>
    %37 = vector.shape_cast %36 : vector<128xf32> to vector<128x1xf32>
    %38 = arith.subf %35, %37 : vector<128x1xf32>
    %39 = math.exp %38 : vector<128x1xf32>
    %cst_27 = arith.constant dense<0.000000e+00> : vector<128xf32>
    %40 = vector.multi_reduction <add>, %39, %cst_27 [1] : vector<128x1xf32> to vector<128xf32>
    %41 = vector.shape_cast %40 : vector<128xf32> to vector<128x1xf32>
    %42 = arith.divf %39, %41 : vector<128x1xf32>
    %43 = vector.shape_cast %42 : vector<128x1xf32> to vector<128x1xf32>
    %44 = vector.broadcast %43 : vector<128x1xf32> to vector<128x128xf32>
    %c0_28 = arith.constant 0 : index
    %c0_29 = arith.constant 0 : index
    %45 = vector.load %arg12[%c0_28, %c0_29] : memref<128x128xf32, #tpu.memory_space<vmem>>, vector<128x128xf32>
    tpu.vector_store %arg12[%c0_28, %c0_29], %44 {strides = array<i32>} : memref<128x128xf32, #tpu.memory_space<vmem>>, vector<128x128xf32>,
    %46 = vector.shape_cast %35 : vector<128x1xf32> to vector<128x1xf32>
    %47 = vector.broadcast %46 : vector<128x1xf32> to vector<128x128xf32>
    %c0_30 = arith.constant 0 : index
    %c0_31 = arith.constant 0 : index
    %48 = vector.load %arg13[%c0_30, %c0_31] : memref<128x128xf32, #tpu.memory_space<vmem>>, vector<128x128xf32>
    tpu.vector_store %arg13[%c0_30, %c0_31], %47 {strides = array<i32>} : memref<128x128xf32, #tpu.memory_space<vmem>>, vector<128x128xf32>,
    return
  }
  func.func @transform_0(%arg0: i32) -> (i32, i32) {
    %c0_i32 = arith.constant 0 : i32
    %c0_i32_0 = arith.constant 0 : i32
    return %arg0, %c0_i32 : i32, i32
  }
  func.func @transform_1(%arg0: i32) -> (i32, i32) {
    %c0_i32 = arith.constant 0 : i32
    %c0_i32_0 = arith.constant 0 : i32
    return %arg0, %c0_i32 : i32, i32
  }
  func.func @transform_2(%arg0: i32) -> (i32, i32) {
    %c0_i32 = arith.constant 0 : i32
    %c0_i32_0 = arith.constant 0 : i32
    return %arg0, %c0_i32 : i32, i32
  }
  func.func @transform_3(%arg0: i32) -> (i32, i32) {
    %c0_i32 = arith.constant 0 : i32
    %c0_i32_0 = arith.constant 0 : i32
    %c0_i32_1 = arith.constant 0 : i32
    return %c0_i32, %c0_i32_0 : i32, i32
  }
  func.func @transform_4(%arg0: i32) -> (i32, i32) {
    %c0_i32 = arith.constant 0 : i32
    %c0_i32_0 = arith.constant 0 : i32
    %c0_i32_1 = arith.constant 0 : i32
    return %c0_i32, %c0_i32_0 : i32, i32
  }
  func.func @transform_5(%arg0: i32) -> (i32, i32) {
    %c0_i32 = arith.constant 0 : i32
    %c0_i32_0 = arith.constant 0 : i32
    %c0_i32_1 = arith.constant 0 : i32
    return %c0_i32, %c0_i32_0 : i32, i32
  }
  func.func @transform_6(%arg0: i32) -> (i32, i32) {
    %c0_i32 = arith.constant 0 : i32
    %c0_i32_0 = arith.constant 0 : i32
    %c0_i32_1 = arith.constant 0 : i32
    return %c0_i32, %c0_i32_0 : i32, i32
  }
  func.func @transform_7(%arg0: i32) -> (i32, i32) {
    %c0_i32 = arith.constant 0 : i32
    %c0_i32_0 = arith.constant 0 : i32
    %c0_i32_1 = arith.constant 0 : i32
    return %c0_i32, %c0_i32_0 : i32, i32
  }
  func.func @transform_8(%arg0: i32) -> (i32, i32) {
    %c0_i32 = arith.constant 0 : i32
    %c0_i32_0 = arith.constant 0 : i32
    %c0_i32_1 = arith.constant 0 : i32
    return %c0_i32, %c0_i32_0 : i32, i32
  }
  func.func @transform_9(%arg0: i32) -> (i32, i32) {
    %c0_i32 = arith.constant 0 : i32
    %c0_i32_0 = arith.constant 0 : i32
    %c0_i32_1 = arith.constant 0 : i32
    return %c0_i32, %c0_i32_0 : i32, i32
  }
  func.func @transform_10(%arg0: i32) -> (i32, i32) {
    %c0_i32 = arith.constant 0 : i32
    %c0_i32_0 = arith.constant 0 : i32
    %c0_i32_1 = arith.constant 0 : i32
    return %c0_i32, %c0_i32_0 : i32, i32
  }
  func.func @transform_11(%arg0: i32) -> (i32, i32) {
    %c0_i32 = arith.constant 0 : i32
    %c0_i32_0 = arith.constant 0 : i32
    return %arg0, %c0_i32 : i32, i32
  }
  func.func @transform_12(%arg0: i32) -> (i32, i32) {
    %c0_i32 = arith.constant 0 : i32
    %c0_i32_0 = arith.constant 0 : i32
    return %arg0, %c0_i32 : i32, i32
  }
}

</mosaic_0001>

<llo_original>
// kernel: tpu_custom_call.1
$region0: #{tpu_custom_call.1}
  #allocation0 [shape = 'u32[]', space=smem, size = 0x4, offset = 0x4, fixed_abs, tag = 'smem constant byte address 0x4 - core index']
  #allocation1 [shape = 'u32[144,128]{1,0:T(1,128)}', space=vmem, size = 0x12000, scoped, tag = 'internal scratch']
  #allocation2 [shape = 'f32[1,1]{1,0:T(1,128)S(1)}', space=vmem, size = 0x200, scoped, tag = 'scoped memory for tpu_custom_call.1']
  %s0 = inlined_call_operand.hbm [shape: bf16[256,256], index: 0, kind: input, shape index: {}]
  %s1 = inlined_call_operand.hbm [shape: bf16[256,256], index: 1, kind: input, shape index: {}]
  %s2 = inlined_call_operand.hbm [shape: bf16[256,128], index: 2, kind: input, shape index: {}]
  %s3 = inlined_call_operand.hbm [shape: bf16[256,256], index: 3, kind: input, shape index: {}]
  %s4 = inlined_call_operand.vmem [shape: f32[1,256], index: 4, kind: input, shape index: {}]
  %s5 = inlined_call_operand.hbm [shape: bf16[256,256], index: 5, kind: input, shape index: {}]
  %s6 = inlined_call_operand.vmem [shape: f32[1,256], index: 6, kind: input, shape index: {}]
  %s7 = inlined_call_operand.hbm [shape: bf16[128,256], index: 7, kind: input, shape index: {}]
  %s8 = inlined_call_operand.vmem [shape: f32[1,256], index: 8, kind: input, shape index: {}]
  %s9 = inlined_call_operand.vmem [shape: f32[1,256], index: 9, kind: input, shape index: {}]
  %s10 = inlined_call_operand.<no memory space> [shape: f32[1,1], index: 10, kind: input, shape index: {}]
  %s11 = inlined_call_operand.hbm [shape: f32[256,128], index: 11, kind: output, shape index: {0}]
  %s12 = inlined_call_operand.hbm [shape: f32[256,128], index: 12, kind: output, shape index: {1}]
  %13 = xla_tuple %s11, %s12
  %s14 = sld [smem:[#allocation0]]
  $region109: #{tpu_custom_call.1} parent=0
    _
  %s16 = ssub.s32 1, %s14
  %s17 = scalar_select 0, %s16, %s14
  %v18 = vstv %s10
  %19 = vst [vmem:[#allocation2] sm:$0x1] %v18
  $region1: #{tpu_custom_call.1} parent=0
    #allocation3 [shape = 'u8[131072]{0}', space=vmem, size = 0x20000, scoped, tag = 'input window, operand 0']
    #allocation4 [shape = 's32[2]{0}', space=sflag, size = 0x8, scoped, tag = 'scoped memory for tpu_custom_call.1']
    #allocation5 [shape = 's32[2]{0}', space=sflag, size = 0x8, scoped, tag = 'scoped memory for tpu_custom_call.1']
    #allocation6 [shape = 'u8[131072]{0}', space=vmem, size = 0x20000, scoped, tag = 'input window, operand 1']
    #allocation7 [shape = 's32[2]{0}', space=sflag, size = 0x8, scoped, tag = 'scoped memory for tpu_custom_call.1']
    #allocation8 [shape = 'u8[65536]{0}', space=vmem, size = 0x10000, scoped, tag = 'input window, operand 2']
    #allocation9 [shape = 'u8[131072]{0}', space=vmem, size = 0x20000, scoped, tag = 'input window, operand 3, single buffered']
    #allocation10 [shape = 's32[1]{0}', space=sflag, size = 0x4, scoped, tag = 'scoped memory for tpu_custom_call.1']
    #allocation11 [shape = 'u8[131072]{0}', space=vmem, size = 0x20000, scoped, tag = 'input window, operand 5, single buffered']
    #allocation12 [shape = 'u8[65536]{0}', space=vmem, size = 0x10000, scoped, tag = 'input window, operand 7, single buffered']
    #allocation13 [shape = 's32[1]{0}', space=sflag, size = 0x4, scoped, tag = 'scoped memory for tpu_custom_call.1']
    #allocation14 [shape = 'u8[131072]{0}', space=vmem, size = 0x20000, scoped, tag = 'output window, operand 0']
    #allocation15 [shape = 'u8[131072]{0}', space=vmem, size = 0x20000, scoped, tag = 'output window, operand 1']
    #allocation16 [shape = 's32[2]{0}', space=sflag, size = 0x8, scoped, tag = 'scoped memory for tpu_custom_call.1']
    %20 = vsyncpa [#allocation4], 0
    %s21 = scalar_lea.sflag [#allocation4], 1
    %22 = vsyncpa %s21, 0
    %23 = vsyncpa [#allocation7], 0
    %s24 = scalar_lea.sflag [#allocation7], 1
    %25 = vsyncpa %s24, 0
    %26 = vsyncpa [#allocation10], 0
    %27 = vsyncpa [#allocation13], 0
    %28 = vsyncpa [#allocation5], 0
    %s29 = scalar_lea.sflag [#allocation5], 1
    %30 = vsyncpa %s29, 0
    %31 = vsyncpa [#allocation16], 0
    %s32 = scalar_lea.sflag [#allocation16], 1
    %33 = vsyncpa %s32, 0
    loop: start=0, step=1, limit=4
    $region2: #{tpu_custom_call.1} parent=1 // loop_pre_header
      _
    $region3: #{tpu_custom_call.1} parent=1 // loop_header
      %s35 = sphi 0, %s39
      %p36 = scmp.ge.s32.totalorder %s35, 4
      %s45 = sphi 0, %s47
      %s48 = sphi 0, %s45
      %s49 = sphi 0, %s48
      %s65 = sphi 0, %s49
      %s71 = sphi 0, %s73
      %s74 = sphi 0, %s71
      %s75 = sphi 0, %s74
      %s91 = sphi 0, %s75
      %s97 = sphi 0, %s99
      %s100 = sphi 0, %s97
      %s101 = sphi 0, %s100
      %s117 = sphi 0, %s101
      %s121 = sphi 0, %s121
      %s123 = sphi 0, %s121
      %s124 = sphi 0, %s123
      %s138 = sphi 0, %s124
      %s142 = sphi 0, %s142
      %s144 = sphi 0, %s142
      %s145 = sphi 0, %s144
      %s159 = sphi 0, %s145
      %s163 = sphi 0, %s163
      %s165 = sphi 0, %s163
      %s166 = sphi 0, %s165
      %s180 = sphi 0, %s166
      %s184 = sphi 0, %s184
      %s186 = sphi 0, %s184
      %s187 = sphi 0, %s186
      %s201 = sphi 0, %s187
      %s205 = sphi 0, %s205
      %s207 = sphi 0, %s205
      %s208 = sphi 0, %s207
      %s222 = sphi 0, %s208
      %s226 = sphi 0, %s226
      %s228 = sphi 0, %s226
      %s229 = sphi 0, %s228
      %s243 = sphi 0, %s229
      %s247 = sphi 0, %s247
      %s249 = sphi 0, %s247
      %s250 = sphi 0, %s249
      %s264 = sphi 0, %s250
      %s268 = sphi 0, %s268
      %s270 = sphi 0, %s268
      %s271 = sphi 0, %s270
      %s285 = sphi 0, %s271
      %s291 = sphi 0, %s293
      %s294 = sphi 0, %s291
      %s295 = sphi 0, %s294
      %s311 = sphi 0, %s295
      %s317 = sphi 0, %s319
      %s320 = sphi 0, %s317
      %s321 = sphi 0, %s320
      %s337 = sphi 0, %s321
    $region4: #{tpu_custom_call.1} parent=1 // loop_header_branch
      %38 = sbr.rel (%p36) target = $region8
    $region5: #{tpu_custom_call.1} parent=1 // loop_body
      %s40 = ssub.s32 %s35, 1
      %s41 = ssub.s32 %s35, 2
      %s42 = sadd.s32 %s35, 1
      %s43 = ssub.s32 %s35, %s42
      %p44 = scmp.eq.s32.totalorder %s43, 0
      %s46 = sadd.s32 %s45, 1
      %s47 = scalar_select %p44, %s45, %s46
      %p50 = pneg %p44
      %p51 = scmp.eq.s32.totalorder %s35, 1
      %p52 = por %p50, %p51
      %p53 = scmp.ne.s32.totalorder %s45, %s48
      %p54 = scmp.eq.s32.totalorder %s35, 0
      %p55 = por %p53, %p54
      %p56 = scmp.ne.s32.totalorder %s45, %s48
      %p57 = scmp.eq.s32.totalorder %s40, 1
      %p58 = por %p56, %p57
      %p59 = scmp.ne.s32.totalorder %s48, %s49
      %p60 = scmp.eq.s32.totalorder %s40, 0
      %p61 = por %p59, %p60
      %p62 = scmp.ne.s32.totalorder %s48, %s49
      %p63 = scmp.eq.s32.totalorder %s41, 1
      %p64 = por %p62, %p63
      %p66 = scmp.ne.s32.totalorder %s49, %s65
      %p67 = scmp.eq.s32.totalorder %s41, 0
      %p68 = por %p66, %p67
      %s69 = ssub.s32 %s35, %s42
      %p70 = scmp.eq.s32.totalorder %s69, 0
      %s72 = sadd.s32 %s71, 1
      %s73 = scalar_select %p70, %s71, %s72
      %p76 = pneg %p70
      %p77 = scmp.eq.s32.totalorder %s35, 1
      %p78 = por %p76, %p77
      %p79 = scmp.ne.s32.totalorder %s71, %s74
      %p80 = scmp.eq.s32.totalorder %s35, 0
      %p81 = por %p79, %p80
      %p82 = scmp.ne.s32.totalorder %s71, %s74
      %p83 = scmp.eq.s32.totalorder %s40, 1
      %p84 = por %p82, %p83
      %p85 = scmp.ne.s32.totalorder %s74, %s75
      %p86 = scmp.eq.s32.totalorder %s40, 0
      %p87 = por %p85, %p86
      %p88 = scmp.ne.s32.totalorder %s74, %s75
      %p89 = scmp.eq.s32.totalorder %s41, 1
      %p90 = por %p88, %p89
      %p92 = scmp.ne.s32.totalorder %s75, %s91
      %p93 = scmp.eq.s32.totalorder %s41, 0
      %p94 = por %p92, %p93
      %s95 = ssub.s32 %s35, %s42
      %p96 = scmp.eq.s32.totalorder %s95, 0
      %s98 = sadd.s32 %s97, 1
      %s99 = scalar_select %p96, %s97, %s98
      %p102 = pneg %p96
      %p103 = scmp.eq.s32.totalorder %s35, 1
      %p104 = por %p102, %p103
      %p105 = scmp.ne.s32.totalorder %s97, %s100
      %p106 = scmp.eq.s32.totalorder %s35, 0
      %p107 = por %p105, %p106
      %p108 = scmp.ne.s32.totalorder %s97, %s100
      %p109 = scmp.eq.s32.totalorder %s40, 1
      %p110 = por %p108, %p109
      %p111 = scmp.ne.s32.totalorder %s100, %s101
      %p112 = scmp.eq.s32.totalorder %s40, 0
      %p113 = por %p111, %p112
      %p114 = scmp.ne.s32.totalorder %s100, %s101
      %p115 = scmp.eq.s32.totalorder %s41, 1
      %p116 = por %p114, %p115
      %p118 = scmp.ne.s32.totalorder %s101, %s117
      %p119 = scmp.eq.s32.totalorder %s41, 0
      %p120 = por %p118, %p119
      %s122 = sadd.s32 %s121, 1
      %p125 = scmp.eq.s32.totalorder %s35, 1
      %p126 = scmp.ne.s32.totalorder %s121, %s123
      %p127 = scmp.eq.s32.totalorder %s35, 0
      %p128 = por %p126, %p127
      %p129 = scmp.ne.s32.totalorder %s121, %s123
      %p130 = scmp.eq.s32.totalorder %s40, 1
      %p131 = por %p129, %p130
      %p132 = scmp.ne.s32.totalorder %s123, %s124
      %p133 = scmp.eq.s32.totalorder %s40, 0
      %p134 = por %p132, %p133
      %p135 = scmp.ne.s32.totalorder %s123, %s124
      %p136 = scmp.eq.s32.totalorder %s41, 1
      %p137 = por %p135, %p136
      %p139 = scmp.ne.s32.totalorder %s124, %s138
      %p140 = scmp.eq.s32.totalorder %s41, 0
      %p141 = por %p139, %p140
      %s143 = sadd.s32 %s142, 1
      %p146 = scmp.eq.s32.totalorder %s35, 1
      %p147 = scmp.ne.s32.totalorder %s142, %s144
      %p148 = scmp.eq.s32.totalorder %s35, 0
      %p149 = por %p147, %p148
      %p150 = scmp.ne.s32.totalorder %s142, %s144
      %p151 = scmp.eq.s32.totalorder %s40, 1
      %p152 = por %p150, %p151
      %p153 = scmp.ne.s32.totalorder %s144, %s145
      %p154 = scmp.eq.s32.totalorder %s40, 0
      %p155 = por %p153, %p154
      %p156 = scmp.ne.s32.totalorder %s144, %s145
      %p157 = scmp.eq.s32.totalorder %s41, 1
      %p158 = por %p156, %p157
      %p160 = scmp.ne.s32.totalorder %s145, %s159
      %p161 = scmp.eq.s32.totalorder %s41, 0
      %p162 = por %p160, %p161
      %s164 = sadd.s32 %s163, 1
      %p167 = scmp.eq.s32.totalorder %s35, 1
      %p168 = scmp.ne.s32.totalorder %s163, %s165
      %p169 = scmp.eq.s32.totalorder %s35, 0
      %p170 = por %p168, %p169
      %p171 = scmp.ne.s32.totalorder %s163, %s165
      %p172 = scmp.eq.s32.totalorder %s40, 1
      %p173 = por %p171, %p172
      %p174 = scmp.ne.s32.totalorder %s165, %s166
      %p175 = scmp.eq.s32.totalorder %s40, 0
      %p176 = por %p174, %p175
      %p177 = scmp.ne.s32.totalorder %s165, %s166
      %p178 = scmp.eq.s32.totalorder %s41, 1
      %p179 = por %p177, %p178
      %p181 = scmp.ne.s32.totalorder %s166, %s180
      %p182 = scmp.eq.s32.totalorder %s41, 0
      %p183 = por %p181, %p182
      %s185 = sadd.s32 %s184, 1
      %p188 = scmp.eq.s32.totalorder %s35, 1
      %p189 = scmp.ne.s32.totalorder %s184, %s186
      %p190 = scmp.eq.s32.totalorder %s35, 0
      %p191 = por %p189, %p190
      %p192 = scmp.ne.s32.totalorder %s184, %s186
      %p193 = scmp.eq.s32.totalorder %s40, 1
      %p194 = por %p192, %p193
      %p195 = scmp.ne.s32.totalorder %s186, %s187
      %p196 = scmp.eq.s32.totalorder %s40, 0
      %p197 = por %p195, %p196
      %p198 = scmp.ne.s32.totalorder %s186, %s187
      %p199 = scmp.eq.s32.totalorder %s41, 1
      %p200 = por %p198, %p199
      %p202 = scmp.ne.s32.totalorder %s187, %s201
      %p203 = scmp.eq.s32.totalorder %s41, 0
      %p204 = por %p202, %p203
      %s206 = sadd.s32 %s205, 1
      %p209 = scmp.eq.s32.totalorder %s35, 1
      %p210 = scmp.ne.s32.totalorder %s205, %s207
      %p211 = scmp.eq.s32.totalorder %s35, 0
      %p212 = por %p210, %p211
      %p213 = scmp.ne.s32.totalorder %s205, %s207
      %p214 = scmp.eq.s32.totalorder %s40, 1
      %p215 = por %p213, %p214
      %p216 = scmp.ne.s32.totalorder %s207, %s208
      %p217 = scmp.eq.s32.totalorder %s40, 0
      %p218 = por %p216, %p217
      %p219 = scmp.ne.s32.totalorder %s207, %s208
      %p220 = scmp.eq.s32.totalorder %s41, 1
      %p221 = por %p219, %p220
      %p223 = scmp.ne.s32.totalorder %s208, %s222
      %p224 = scmp.eq.s32.totalorder %s41, 0
      %p225 = por %p223, %p224
      %s227 = sadd.s32 %s226, 1
      %p230 = scmp.eq.s32.totalorder %s35, 1
      %p231 = scmp.ne.s32.totalorder %s226, %s228
      %p232 = scmp.eq.s32.totalorder %s35, 0
      %p233 = por %p231, %p232
      %p234 = scmp.ne.s32.totalorder %s226, %s228
      %p235 = scmp.eq.s32.totalorder %s40, 1
      %p236 = por %p234, %p235
      %p237 = scmp.ne.s32.totalorder %s228, %s229
      %p238 = scmp.eq.s32.totalorder %s40, 0
      %p239 = por %p237, %p238
      %p240 = scmp.ne.s32.totalorder %s228, %s229
      %p241 = scmp.eq.s32.totalorder %s41, 1
      %p242 = por %p240, %p241
      %p244 = scmp.ne.s32.totalorder %s229, %s243
      %p245 = scmp.eq.s32.totalorder %s41, 0
      %p246 = por %p244, %p245
      %s248 = sadd.s32 %s247, 1
      %p251 = scmp.eq.s32.totalorder %s35, 1
      %p252 = scmp.ne.s32.totalorder %s247, %s249
      %p253 = scmp.eq.s32.totalorder %s35, 0
      %p254 = por %p252, %p253
      %p255 = scmp.ne.s32.totalorder %s247, %s249
      %p256 = scmp.eq.s32.totalorder %s40, 1
      %p257 = por %p255, %p256
      %p258 = scmp.ne.s32.totalorder %s249, %s250
      %p259 = scmp.eq.s32.totalorder %s40, 0
      %p260 = por %p258, %p259
      %p261 = scmp.ne.s32.totalorder %s249, %s250
      %p262 = scmp.eq.s32.totalorder %s41, 1
      %p263 = por %p261, %p262
      %p265 = scmp.ne.s32.totalorder %s250, %s264
      %p266 = scmp.eq.s32.totalorder %s41, 0
      %p267 = por %p265, %p266
      %s269 = sadd.s32 %s268, 1
      %p272 = scmp.eq.s32.totalorder %s35, 1
      %p273 = scmp.ne.s32.totalorder %s268, %s270
      %p274 = scmp.eq.s32.totalorder %s35, 0
      %p275 = por %p273, %p274
      %p276 = scmp.ne.s32.totalorder %s268, %s270
      %p277 = scmp.eq.s32.totalorder %s40, 1
      %p278 = por %p276, %p277
      %p279 = scmp.ne.s32.totalorder %s270, %s271
      %p280 = scmp.eq.s32.totalorder %s40, 0
      %p281 = por %p279, %p280
      %p282 = scmp.ne.s32.totalorder %s270, %s271
      %p283 = scmp.eq.s32.totalorder %s41, 1
      %p284 = por %p282, %p283
      %p286 = scmp.ne.s32.totalorder %s271, %s285
      %p287 = scmp.eq.s32.totalorder %s41, 0
      %p288 = por %p286, %p287
      %s289 = ssub.s32 %s35, %s42
      %p290 = scmp.eq.s32.totalorder %s289, 0
      %s292 = sadd.s32 %s291, 1
      %s293 = scalar_select %p290, %s291, %s292
      %p296 = pneg %p290
      %p297 = scmp.eq.s32.totalorder %s35, 1
      %p298 = por %p296, %p297
      %p299 = scmp.ne.s32.totalorder %s291, %s294
      %p300 = scmp.eq.s32.totalorder %s35, 0
      %p301 = por %p299, %p300
      %p302 = scmp.ne.s32.totalorder %s291, %s294
      %p303 = scmp.eq.s32.totalorder %s40, 1
      %p304 = por %p302, %p303
      %p305 = scmp.ne.s32.totalorder %s294, %s295
      %p306 = scmp.eq.s32.totalorder %s40, 0
      %p307 = por %p305, %p306
      %p308 = scmp.ne.s32.totalorder %s294, %s295
      %p309 = scmp.eq.s32.totalorder %s41, 1
      %p310 = por %p308, %p309
      %p312 = scmp.ne.s32.totalorder %s295, %s311
      %p313 = scmp.eq.s32.totalorder %s41, 0
      %p314 = por %p312, %p313
      %s315 = ssub.s32 %s35, %s42
      %p316 = scmp.eq.s32.totalorder %s315, 0
      %s318 = sadd.s32 %s317, 1
      %s319 = scalar_select %p316, %s317, %s318
      %p322 = pneg %p316
      %p323 = scmp.eq.s32.totalorder %s35, 1
      %p324 = por %p322, %p323
      %p325 = scmp.ne.s32.totalorder %s317, %s320
      %p326 = scmp.eq.s32.totalorder %s35, 0
      %p327 = por %p325, %p326
      %p328 = scmp.ne.s32.totalorder %s317, %s320
      %p329 = scmp.eq.s32.totalorder %s40, 1
      %p330 = por %p328, %p329
      %p331 = scmp.ne.s32.totalorder %s320, %s321
      %p332 = scmp.eq.s32.totalorder %s40, 0
      %p333 = por %p331, %p332
      %p334 = scmp.ne.s32.totalorder %s320, %s321
      %p335 = scmp.eq.s32.totalorder %s41, 1
      %p336 = por %p334, %p335
      %p338 = scmp.ne.s32.totalorder %s321, %s337
      %p339 = scmp.eq.s32.totalorder %s41, 0
      %p340 = por %p338, %p339
      %p341 = scmp.le.s32.totalorder 1, %s35
      %p342 = scmp.lt.s32.totalorder %s35, 3
      %p343 = pnand %p341, %p342
      %p344 = pneg %p343
      // Predicated region
      $region9: #{tpu_custom_call.1} parent=5 // pred_check
        _
      $region10: #{tpu_custom_call.1} parent=5 // pred_check_branch
        %346 = sbr.rel (%p343) target = $region12
      $region11: #{tpu_custom_call.1} parent=5 // pred_region
        %s347 = ssub.s32 %s35, 1
        // Predicated region
        $region13: #{tpu_custom_call.1} parent=11 // pred_check
          %p348 = pneg %p134
        $region14: #{tpu_custom_call.1} parent=11 // pred_check_branch
          %350 = sbr.rel (%p348) target = $region16
        $region15: #{tpu_custom_call.1} parent=11 // pred_region
          %s352 = ssub.s32 4096, 4096
          %353 = vsyncadd [#allocation10], %s352
          %s354 = sshll.u32 [#allocation9], 4
          %s355 = int_to_ptr.vmem [resolvable:$true] %s354
          %360 = dma.hbm_to_vmem [thread:$0]  %s3, 4096, %s355, [#allocation10], 128, 128, 8
        $region16: #{tpu_custom_call.1} parent=11 // pred_fallthru
          _
        // Predicated region
        $region17: #{tpu_custom_call.1} parent=11 // pred_check
          %p361 = pneg %p155
        $region18: #{tpu_custom_call.1} parent=11 // pred_check_branch
          %363 = sbr.rel (%p361) target = $region20
        $region19: #{tpu_custom_call.1} parent=11 // pred_region
          _
        $region20: #{tpu_custom_call.1} parent=11 // pred_fallthru
          _
        // Predicated region
        $region21: #{tpu_custom_call.1} parent=11 // pred_check
          %p364 = pneg %p176
        $region22: #{tpu_custom_call.1} parent=11 // pred_check_branch
          %366 = sbr.rel (%p364) target = $region24
        $region23: #{tpu_custom_call.1} parent=11 // pred_region
          %s368 = ssub.s32 4096, 4096
          %369 = vsyncadd [#allocation10], %s368
          %s370 = sshll.u32 [#allocation11], 4
          %s371 = int_to_ptr.vmem [resolvable:$true] %s370
          %376 = dma.hbm_to_vmem [thread:$0]  %s5, 4096, %s371, [#allocation10], 128, 128, 8
        $region24: #{tpu_custom_call.1} parent=11 // pred_fallthru
          _
        // Predicated region
        $region25: #{tpu_custom_call.1} parent=11 // pred_check
          %p377 = pneg %p197
        $region26: #{tpu_custom_call.1} parent=11 // pred_check_branch
          %379 = sbr.rel (%p377) target = $region28
        $region27: #{tpu_custom_call.1} parent=11 // pred_region
          _
        $region28: #{tpu_custom_call.1} parent=11 // pred_fallthru
          _
        // Predicated region
        $region29: #{tpu_custom_call.1} parent=11 // pred_check
          %p380 = pneg %p218
        $region30: #{tpu_custom_call.1} parent=11 // pred_check_branch
          %382 = sbr.rel (%p380) target = $region32
        $region31: #{tpu_custom_call.1} parent=11 // pred_region
          %s384 = ssub.s32 2048, 2048
          %385 = vsyncadd [#allocation13], %s384
          %s386 = sshll.u32 [#allocation12], 4
          %s387 = int_to_ptr.vmem [resolvable:$true] %s386
          %392 = dma.hbm_to_vmem [thread:$0]  %s7, 2048, %s387, [#allocation13], 128, 128, 8
        $region32: #{tpu_custom_call.1} parent=11 // pred_fallthru
          _
        // Predicated region
        $region33: #{tpu_custom_call.1} parent=11 // pred_check
          %p393 = pneg %p239
        $region34: #{tpu_custom_call.1} parent=11 // pred_check_branch
          %395 = sbr.rel (%p393) target = $region36
        $region35: #{tpu_custom_call.1} parent=11 // pred_region
          _
        $region36: #{tpu_custom_call.1} parent=11 // pred_fallthru
          _
        // Predicated region
        $region37: #{tpu_custom_call.1} parent=11 // pred_check
          %p396 = pneg %p260
        $region38: #{tpu_custom_call.1} parent=11 // pred_check_branch
          %398 = sbr.rel (%p396) target = $region40
        $region39: #{tpu_custom_call.1} parent=11 // pred_region
          _
        $region40: #{tpu_custom_call.1} parent=11 // pred_fallthru
          _
        // Predicated region
        $region41: #{tpu_custom_call.1} parent=11 // pred_check
          %p399 = pneg %p281
        $region42: #{tpu_custom_call.1} parent=11 // pred_check_branch
          %401 = sbr.rel (%p399) target = $region44
        $region43: #{tpu_custom_call.1} parent=11 // pred_region
          _
        $region44: #{tpu_custom_call.1} parent=11 // pred_fallthru
          _
      $region12: #{tpu_custom_call.1} parent=5 // pred_fallthru
        _
      %p402 = scmp.lt.s32.totalorder %s35, 2
      // Predicated region
      $region45: #{tpu_custom_call.1} parent=5 // pred_check
        %p403 = pneg %p402
      $region46: #{tpu_custom_call.1} parent=5 // pred_check_branch
        %405 = sbr.rel (%p403) target = $region48
      $region47: #{tpu_custom_call.1} parent=5 // pred_region
        // Predicated region
        $region49: #{tpu_custom_call.1} parent=47 // pred_check
          %p406 = pneg %p55
        $region50: #{tpu_custom_call.1} parent=47 // pred_check_branch
          %408 = sbr.rel (%p406) target = $region52
        $region51: #{tpu_custom_call.1} parent=47 // pred_region
          %s409 = sand.u32 %s45, 1
          %s410 = scalar_lea.sflag [#allocation4], %s409
          %s411 = sand.u32 %s45, 1
          %s412 = smul.addr %s411, 128
          %s413 = scalar_lea.vmem [#allocation3], %s412
          %s414 = smul.u32 16, %s35
          %s416 = ssub.s32 2048, 2048
          %417 = vsyncadd %s410, %s416
          %s418 = smul.addr %s414, 2
          %s419 = smul.addr %s418, 64
          %s420 = scalar_lea.hbm %s0, %s419
          %s421 = sshll.u32 %s413, 4
          %s422 = int_to_ptr.vmem [resolvable:$true] %s421
          %427 = dma.hbm_to_vmem [thread:$0]  %s420, 2048, %s422, %s410, 128, 128, 8
        $region52: #{tpu_custom_call.1} parent=47 // pred_fallthru
          _
        // Predicated region
        $region53: #{tpu_custom_call.1} parent=47 // pred_check
          %p428 = pneg %p81
        $region54: #{tpu_custom_call.1} parent=47 // pred_check_branch
          %430 = sbr.rel (%p428) target = $region56
        $region55: #{tpu_custom_call.1} parent=47 // pred_region
          %s431 = sand.u32 %s35, 1
          %s432 = scalar_lea.sflag [#allocation7], %s431
          %s433 = sand.u32 %s71, 1
          %s434 = smul.addr %s433, 128
          %s435 = scalar_lea.vmem [#allocation6], %s434
          %s436 = smul.u32 16, %s35
          %s438 = ssub.s32 2048, 2048
          %439 = vsyncadd %s432, %s438
          %s440 = smul.addr %s436, 2
          %s441 = smul.addr %s440, 64
          %s442 = scalar_lea.hbm %s1, %s441
          %s443 = sshll.u32 %s435, 4
          %s444 = int_to_ptr.vmem [resolvable:$true] %s443
          %449 = dma.hbm_to_vmem [thread:$0]  %s442, 2048, %s444, %s432, 128, 128, 8
        $region56: #{tpu_custom_call.1} parent=47 // pred_fallthru
          _
        // Predicated region
        $region57: #{tpu_custom_call.1} parent=47 // pred_check
          %p450 = pneg %p107
        $region58: #{tpu_custom_call.1} parent=47 // pred_check_branch
          %452 = sbr.rel (%p450) target = $region60
        $region59: #{tpu_custom_call.1} parent=47 // pred_region
          %s453 = sand.u32 %s35, 1
          %s454 = scalar_lea.sflag [#allocation7], %s453
          %s455 = sand.u32 %s97, 1
          %s456 = smul.addr %s455, 64
          %s457 = scalar_lea.vmem [#allocation8], %s456
          %s458 = smul.u32 16, %s35
          %s460 = ssub.s32 1024, 1024
          %461 = vsyncadd %s454, %s460
          %s462 = smul.addr %s458, 64
          %s463 = scalar_lea.hbm %s2, %s462
          %s464 = sshll.u32 %s457, 4
          %s465 = int_to_ptr.vmem [resolvable:$true] %s464
          %470 = dma.hbm_to_vmem [thread:$0]  %s463, 1024, %s465, %s454, 64, 64, 4
        $region60: #{tpu_custom_call.1} parent=47 // pred_fallthru
          _
      $region48: #{tpu_custom_call.1} parent=5 // pred_fallthru
        _
      %p471 = scmp.le.s32.totalorder 1, %s35
      %p472 = scmp.lt.s32.totalorder %s35, 3
      %p473 = pnand %p471, %p472
      %p474 = pneg %p473
      // Predicated region
      $region61: #{tpu_custom_call.1} parent=5 // pred_check
        _
      $region62: #{tpu_custom_call.1} parent=5 // pred_check_branch
        %476 = sbr.rel (%p473) target = $region64
      $region63: #{tpu_custom_call.1} parent=5 // pred_region
        %s477 = ssub.s32 %s35, 1
        %s478 = sand.u32 %s48, 1
        %s479 = scalar_lea.sflag [#allocation4], %s478
        %s480 = sand.u32 %s48, 1
        %s481 = smul.addr %s480, 128
        %s482 = scalar_lea.vmem [#allocation3], %s481
        // Predicated region
        $region65: #{tpu_custom_call.1} parent=63 // pred_check
          %p483 = pneg %p61
        $region66: #{tpu_custom_call.1} parent=63 // pred_check_branch
          %485 = sbr.rel (%p483) target = $region68
        $region67: #{tpu_custom_call.1} parent=63 // pred_region
          %486 = dma.done %s479, 2048
        $region68: #{tpu_custom_call.1} parent=63 // pred_fallthru
          _
        %s487 = sand.u32 %s40, 1
        %s488 = scalar_lea.sflag [#allocation7], %s487
        %s489 = sand.u32 %s74, 1
        %s490 = smul.addr %s489, 128
        %s491 = scalar_lea.vmem [#allocation6], %s490
        // Predicated region
        $region69: #{tpu_custom_call.1} parent=63 // pred_check
          %p492 = pneg %p87
        $region70: #{tpu_custom_call.1} parent=63 // pred_check_branch
          %494 = sbr.rel (%p492) target = $region72
        $region71: #{tpu_custom_call.1} parent=63 // pred_region
          %495 = dma.done %s488, 2048
        $region72: #{tpu_custom_call.1} parent=63 // pred_fallthru
          _
        %s496 = sand.u32 %s40, 1
        %s497 = scalar_lea.sflag [#allocation7], %s496
        %s498 = sand.u32 %s100, 1
        %s499 = smul.addr %s498, 64
        %s500 = scalar_lea.vmem [#allocation8], %s499
        // Predicated region
        $region73: #{tpu_custom_call.1} parent=63 // pred_check
          %p501 = pneg %p113
        $region74: #{tpu_custom_call.1} parent=63 // pred_check_branch
          %503 = sbr.rel (%p501) target = $region76
        $region75: #{tpu_custom_call.1} parent=63 // pred_region
          %504 = dma.done %s497, 1024
        $region76: #{tpu_custom_call.1} parent=63 // pred_fallthru
          _
        // Predicated region
        $region77: #{tpu_custom_call.1} parent=63 // pred_check
          %p505 = pneg %p134
        $region78: #{tpu_custom_call.1} parent=63 // pred_check_branch
          %507 = sbr.rel (%p505) target = $region80
        $region79: #{tpu_custom_call.1} parent=63 // pred_region
          %508 = dma.done [#allocation10], 4096
        $region80: #{tpu_custom_call.1} parent=63 // pred_fallthru
          _
        // Predicated region
        $region81: #{tpu_custom_call.1} parent=63 // pred_check
          %p509 = pneg %p176
        $region82: #{tpu_custom_call.1} parent=63 // pred_check_branch
          %511 = sbr.rel (%p509) target = $region84
        $region83: #{tpu_custom_call.1} parent=63 // pred_region
          %512 = dma.done [#allocation10], 4096
        $region84: #{tpu_custom_call.1} parent=63 // pred_fallthru
          _
        // Predicated region
        $region85: #{tpu_custom_call.1} parent=63 // pred_check
          %p513 = pneg %p218
        $region86: #{tpu_custom_call.1} parent=63 // pred_check_branch
          %515 = sbr.rel (%p513) target = $region88
        $region87: #{tpu_custom_call.1} parent=63 // pred_region
          %516 = dma.done [#allocation13], 2048
        $region88: #{tpu_custom_call.1} parent=63 // pred_fallthru
          _
        %s517 = sand.u32 %s48, 1
        %s518 = scalar_lea.sflag [#allocation4], %s517
        %s519 = sand.u32 %s48, 1
        %s520 = smul.addr %s519, 128
        %s521 = scalar_lea.vmem [#allocation3], %s520
        %p522 = pneg %p61
        %p523 = pneg %p58
        %s524 = sand.u32 %s40, 1
        %s525 = scalar_lea.sflag [#allocation7], %s524
        %s526 = sand.u32 %s74, 1
        %s527 = smul.addr %s526, 128
        %s528 = scalar_lea.vmem [#allocation6], %s527
        %p529 = pneg %p87
        %p530 = pneg %p84
        %s531 = sand.u32 %s40, 1
        %s532 = scalar_lea.sflag [#allocation7], %s531
        %s533 = sand.u32 %s100, 1
        %s534 = smul.addr %s533, 64
        %s535 = scalar_lea.vmem [#allocation8], %s534
        %p536 = pneg %p113
        %p537 = pneg %p110
        %p538 = pneg %p134
        %p539 = pneg %p131
        %p540 = pneg %p155
        %p541 = pneg %p152
        %p542 = pneg %p176
        %p543 = pneg %p173
        %p544 = pneg %p197
        %p545 = pneg %p194
        %p546 = pneg %p218
        %p547 = pneg %p215
        %p548 = pneg %p239
        %p549 = pneg %p236
        %p550 = pneg %p260
        %p551 = pneg %p257
        %p552 = pneg %p281
        %p553 = pneg %p278
        %p554 = pneg %p307
        %p555 = pneg %p304
        %s556 = sand.u32 %s294, 1
        %s557 = scalar_lea.sflag [#allocation5], %s556
        %s558 = sand.u32 %s294, 1
        %s559 = smul.addr %s558, 128
        %s560 = scalar_lea.vmem [#allocation14], %s559
        %p561 = pneg %p333
        %p562 = pneg %p330
        %s563 = sand.u32 %s320, 1
        %s564 = scalar_lea.sflag [#allocation16], %s563
        %s565 = sand.u32 %s320, 1
        %s566 = smul.addr %s565, 128
        %s567 = scalar_lea.vmem [#allocation15], %s566
        %s568 = smul.u32 16, %s40
        %s569 = smul.u32 16, %s40
        %s570 = smul.u32 16, %s40
        %s571 = smul.u32 16, %s40
        %s572 = smul.u32 16, %s40
        %v574 = vld [vmem:[%s482] sm:$0xff]
        %v575 = vld [vmem:[%s482 + $0x8] sm:$0xff]
        %v576 = vld [vmem:[%s482 + $0x10] sm:$0xff]
        %v577 = vld [vmem:[%s482 + $0x18] sm:$0xff]
        %v578 = vld [vmem:[%s482 + $0x20] sm:$0xff]
        %v579 = vld [vmem:[%s482 + $0x28] sm:$0xff]
        %v580 = vld [vmem:[%s482 + $0x30] sm:$0xff]
        %v581 = vld [vmem:[%s482 + $0x38] sm:$0xff]
        %v582 = vld [vmem:[%s482 + $0x40] sm:$0xff]
        %v583 = vld [vmem:[%s482 + $0x48] sm:$0xff]
        %v584 = vld [vmem:[%s482 + $0x50] sm:$0xff]
        %v585 = vld [vmem:[%s482 + $0x58] sm:$0xff]
        %v586 = vld [vmem:[%s482 + $0x60] sm:$0xff]
        %v587 = vld [vmem:[%s482 + $0x68] sm:$0xff]
        %v588 = vld [vmem:[%s482 + $0x70] sm:$0xff]
        %v589 = vld [vmem:[%s482 + $0x78] sm:$0xff]
        %v590 = vld [vmem:[#allocation9] sm:$0xff]
        %v591 = vld [vmem:[#allocation9 + $0x8] sm:$0xff]
        %v592 = vld [vmem:[#allocation9 + $0x10] sm:$0xff]
        %v593 = vld [vmem:[#allocation9 + $0x18] sm:$0xff]
        %v594 = vld [vmem:[#allocation9 + $0x20] sm:$0xff]
        %v595 = vld [vmem:[#allocation9 + $0x28] sm:$0xff]
        %v596 = vld [vmem:[#allocation9 + $0x30] sm:$0xff]
        %v597 = vld [vmem:[#allocation9 + $0x38] sm:$0xff]
        %v598 = vld [vmem:[#allocation9 + $0x40] sm:$0xff]
        %v599 = vld [vmem:[#allocation9 + $0x48] sm:$0xff]
        %v600 = vld [vmem:[#allocation9 + $0x50] sm:$0xff]
        %v601 = vld [vmem:[#allocation9 + $0x58] sm:$0xff]
        %v602 = vld [vmem:[#allocation9 + $0x60] sm:$0xff]
        %v603 = vld [vmem:[#allocation9 + $0x68] sm:$0xff]
        %v604 = vld [vmem:[#allocation9 + $0x70] sm:$0xff]
        %v605 = vld [vmem:[#allocation9 + $0x78] sm:$0xff]
        %v606 = vld [vmem:[#allocation9 + $0x80] sm:$0xff]
        %v607 = vld [vmem:[#allocation9 + $0x88] sm:$0xff]
        %v608 = vld [vmem:[#allocation9 + $0x90] sm:$0xff]
        %v609 = vld [vmem:[#allocation9 + $0x98] sm:$0xff]
        %v610 = vld [vmem:[#allocation9 + $0xa0] sm:$0xff]
        %v611 = vld [vmem:[#allocation9 + $0xa8] sm:$0xff]
        %v612 = vld [vmem:[#allocation9 + $0xb0] sm:$0xff]
        %v613 = vld [vmem:[#allocation9 + $0xb8] sm:$0xff]
        %v614 = vld [vmem:[#allocation9 + $0xc0] sm:$0xff]
        %v615 = vld [vmem:[#allocation9 + $0xc8] sm:$0xff]
        %v616 = vld [vmem:[#allocation9 + $0xd0] sm:$0xff]
        %v617 = vld [vmem:[#allocation9 + $0xd8] sm:$0xff]
        %v618 = vld [vmem:[#allocation9 + $0xe0] sm:$0xff]
        %v619 = vld [vmem:[#allocation9 + $0xe8] sm:$0xff]
        %v620 = vld [vmem:[#allocation9 + $0xf0] sm:$0xff]
        %v621 = vld [vmem:[#allocation9 + $0xf8] sm:$0xff]
        %v622 = vld [vmem:[%s4] sm:$0x3]
        %v624 = vlaneseq
        %v625 = vshrl.u32 %v624, 7
        %v626 = vsub.s32 0, %v625
        %v627 = vrot.slane %v622, %v626
        %v628 = vlaneseq
        %v629 = vshrl.u32 %v628, 7
        %v630 = vsub.s32 1, %v629
        %v631 = vrot.slane %v622, %v630
        %v650 = vunpack.c.l.b16 %v574
        %v651 = vunpack.c.h.b16 %v574
        %v652 = vunpack.c.l.b16 %v575
        %v653 = vunpack.c.h.b16 %v575
        %v654 = vunpack.c.l.b16 %v576
        %v655 = vunpack.c.h.b16 %v576
        %v656 = vunpack.c.l.b16 %v577
        %v657 = vunpack.c.h.b16 %v577
        %v658 = vunpack.c.l.b16 %v578
        %v659 = vunpack.c.h.b16 %v578
        %v660 = vunpack.c.l.b16 %v579
        %v661 = vunpack.c.h.b16 %v579
        %v662 = vunpack.c.l.b16 %v580
        %v663 = vunpack.c.h.b16 %v580
        %v664 = vunpack.c.l.b16 %v581
        %v665 = vunpack.c.h.b16 %v581
        %v666 = vunpack.c.l.b16 %v582
        %v667 = vunpack.c.h.b16 %v582
        %v668 = vunpack.c.l.b16 %v583
        %v669 = vunpack.c.h.b16 %v583
        %v670 = vunpack.c.l.b16 %v584
        %v671 = vunpack.c.h.b16 %v584
        %v672 = vunpack.c.l.b16 %v585
        %v673 = vunpack.c.h.b16 %v585
        %v674 = vunpack.c.l.b16 %v586
        %v675 = vunpack.c.h.b16 %v586
        %v676 = vunpack.c.l.b16 %v587
        %v677 = vunpack.c.h.b16 %v587
        %v678 = vunpack.c.l.b16 %v588
        %v679 = vunpack.c.h.b16 %v588
        %v680 = vunpack.c.l.b16 %v589
        %v681 = vunpack.c.h.b16 %v589
        %v682 = vpack.c.b16 %v652, %v650
        %v683 = vpack.c.b16 %v653, %v651
        %v684 = vpack.c.b16 %v656, %v654
        %v685 = vpack.c.b16 %v657, %v655
        %v686 = vpack.c.b16 %v660, %v658
        %v687 = vpack.c.b16 %v661, %v659
        %v688 = vpack.c.b16 %v664, %v662
        %v689 = vpack.c.b16 %v665, %v663
        %v690 = vpack.c.b16 %v668, %v666
        %v691 = vpack.c.b16 %v669, %v667
        %v692 = vpack.c.b16 %v672, %v670
        %v693 = vpack.c.b16 %v673, %v671
        %v694 = vpack.c.b16 %v676, %v674
        %v695 = vpack.c.b16 %v677, %v675
        %v696 = vpack.c.b16 %v680, %v678
        %v697 = vpack.c.b16 %v681, %v679
        %v746 = vunpack.c.l.b16 %v590
        %v747 = vunpack.c.h.b16 %v590
        %v748 = vunpack.c.l.b16 %v591
        %v749 = vunpack.c.h.b16 %v591
        %v750 = vunpack.c.l.b16 %v592
        %v751 = vunpack.c.h.b16 %v592
        %v752 = vunpack.c.l.b16 %v593
        %v753 = vunpack.c.h.b16 %v593
        %v754 = vunpack.c.l.b16 %v594
        %v755 = vunpack.c.h.b16 %v594
        %v756 = vunpack.c.l.b16 %v595
        %v757 = vunpack.c.h.b16 %v595
        %v758 = vunpack.c.l.b16 %v596
        %v759 = vunpack.c.h.b16 %v596
        %v760 = vunpack.c.l.b16 %v597
        %v761 = vunpack.c.h.b16 %v597
        %v762 = vunpack.c.l.b16 %v598
        %v763 = vunpack.c.h.b16 %v598
        %v764 = vunpack.c.l.b16 %v599
        %v765 = vunpack.c.h.b16 %v599
        %v766 = vunpack.c.l.b16 %v600
        %v767 = vunpack.c.h.b16 %v600
        %v768 = vunpack.c.l.b16 %v601
        %v769 = vunpack.c.h.b16 %v601
        %v770 = vunpack.c.l.b16 %v602
        %v771 = vunpack.c.h.b16 %v602
        %v772 = vunpack.c.l.b16 %v603
        %v773 = vunpack.c.h.b16 %v603
        %v774 = vunpack.c.l.b16 %v604
        %v775 = vunpack.c.h.b16 %v604
        %v776 = vunpack.c.l.b16 %v605
        %v777 = vunpack.c.h.b16 %v605
        %v778 = vunpack.c.l.b16 %v606
        %v779 = vunpack.c.h.b16 %v606
        %v780 = vunpack.c.l.b16 %v607
        %v781 = vunpack.c.h.b16 %v607
        %v782 = vunpack.c.l.b16 %v608
        %v783 = vunpack.c.h.b16 %v608
        %v784 = vunpack.c.l.b16 %v609
        %v785 = vunpack.c.h.b16 %v609
        %v786 = vunpack.c.l.b16 %v610
        %v787 = vunpack.c.h.b16 %v610
        %v788 = vunpack.c.l.b16 %v611
        %v789 = vunpack.c.h.b16 %v611
        %v790 = vunpack.c.l.b16 %v612
        %v791 = vunpack.c.h.b16 %v612
        %v792 = vunpack.c.l.b16 %v613
        %v793 = vunpack.c.h.b16 %v613
        %v794 = vunpack.c.l.b16 %v614
        %v795 = vunpack.c.h.b16 %v614
        %v796 = vunpack.c.l.b16 %v615
        %v797 = vunpack.c.h.b16 %v615
        %v798 = vunpack.c.l.b16 %v616
        %v799 = vunpack.c.h.b16 %v616
        %v800 = vunpack.c.l.b16 %v617
        %v801 = vunpack.c.h.b16 %v617
        %v802 = vunpack.c.l.b16 %v618
        %v803 = vunpack.c.h.b16 %v618
        %v804 = vunpack.c.l.b16 %v619
        %v805 = vunpack.c.h.b16 %v619
        %v806 = vunpack.c.l.b16 %v620
        %v807 = vunpack.c.h.b16 %v620
        %v808 = vunpack.c.l.b16 %v621
        %v809 = vunpack.c.h.b16 %v621
        %v810 = vpack.c.b16 %v748, %v746
        %v811 = vpack.c.b16 %v749, %v747
        %v812 = vpack.c.b16 %v752, %v750
        %v813 = vpack.c.b16 %v753, %v751
        %v814 = vpack.c.b16 %v756, %v754
        %v815 = vpack.c.b16 %v757, %v755
        %v816 = vpack.c.b16 %v760, %v758
        %v817 = vpack.c.b16 %v761, %v759
        %v818 = vpack.c.b16 %v764, %v762
        %v819 = vpack.c.b16 %v765, %v763
        %v820 = vpack.c.b16 %v768, %v766
        %v821 = vpack.c.b16 %v769, %v767
        %v822 = vpack.c.b16 %v772, %v770
        %v823 = vpack.c.b16 %v773, %v771
        %v824 = vpack.c.b16 %v776, %v774
        %v825 = vpack.c.b16 %v777, %v775
        %v826 = vpack.c.b16 %v780, %v778
        %v827 = vpack.c.b16 %v781, %v779
        %v828 = vpack.c.b16 %v784, %v782
        %v829 = vpack.c.b16 %v785, %v783
        %v830 = vpack.c.b16 %v788, %v786
        %v831 = vpack.c.b16 %v789, %v787
        %v832 = vpack.c.b16 %v792, %v790
        %v833 = vpack.c.b16 %v793, %v791
        %v834 = vpack.c.b16 %v796, %v794
        %v835 = vpack.c.b16 %v797, %v795
        %v836 = vpack.c.b16 %v800, %v798
        %v837 = vpack.c.b16 %v801, %v799
        %v838 = vpack.c.b16 %v804, %v802
        %v839 = vpack.c.b16 %v805, %v803
        %v840 = vpack.c.b16 %v808, %v806
        %v841 = vpack.c.b16 %v809, %v807
        %874 = vmatprep.subr.bf16.mxu0 %v811
        %875 = vmatpush1.bf16.msra.mxu0 %v810
        %876 = vmatprep.subr.bf16.mxu0 %v813
        %877 = vmatpush1.bf16.msra.mxu0 %v812
        %878 = vmatprep.subr.bf16.mxu0 %v815
        %879 = vmatpush1.bf16.msra.mxu0 %v814
        %880 = vmatprep.subr.bf16.mxu0 %v817
        %881 = vmatpush1.bf16.msra.mxu0 %v816
        %882 = vmatprep.subr.bf16.mxu0 %v819
        %883 = vmatpush1.bf16.msra.mxu0 %v818
        %884 = vmatprep.subr.bf16.mxu0 %v821
        %885 = vmatpush1.bf16.msra.mxu0 %v820
        %886 = vmatprep.subr.bf16.mxu0 %v823
        %887 = vmatpush1.bf16.msra.mxu0 %v822
        %888 = vmatprep.subr.bf16.mxu0 %v825
        %889 = vmatpush1.bf16.msra.mxu0 %v824
        %890 = vmatprep.subr.bf16.mxu0 %v827
        %891 = vmatpush1.bf16.msra.mxu0 %v826
        %892 = vmatprep.subr.bf16.mxu0 %v829
        %893 = vmatpush1.bf16.msra.mxu0 %v828
        %894 = vmatprep.subr.bf16.mxu0 %v831
        %895 = vmatpush1.bf16.msra.mxu0 %v830
        %896 = vmatprep.subr.bf16.mxu0 %v833
        %897 = vmatpush1.bf16.msra.mxu0 %v832
        %898 = vmatprep.subr.bf16.mxu0 %v835
        %899 = vmatpush1.bf16.msra.mxu0 %v834
        %900 = vmatprep.subr.bf16.mxu0 %v837
        %901 = vmatpush1.bf16.msra.mxu0 %v836
        %902 = vmatprep.subr.bf16.mxu0 %v839
        %903 = vmatpush1.bf16.msra.mxu0 %v838
        %904 = vmatprep.subr.bf16.mxu0 %v841
        %905 = vmatpush1.bf16.msra.mxu0 %v840
        %906 = vmatprep.mubr.bf16.mxu0 %v683
        %907 = vmatmul.mubr.bf16.gmra.mrb[0].mxu0 %v682
        %v908 = vpop.f32.mrb[0].mxu0
        %v909 = vadd.f32 %v627, %v908
        %v910 = vpop.f32.mrb[0].mxu0
        %v911 = vadd.f32 %v631, %v910
        %v912 = vpop.f32.mrb[0].mxu0
        %v913 = vadd.f32 %v627, %v912
        %v914 = vpop.f32.mrb[0].mxu0
        %v915 = vadd.f32 %v631, %v914
        %916 = vmatprep.mubr.bf16.mxu0 %v685
        %917 = vmatmul.mubr.bf16.gmra.mrb[0].mxu0 %v684
        %v918 = vpop.f32.mrb[0].mxu0
        %v919 = vadd.f32 %v627, %v918
        %v920 = vpop.f32.mrb[0].mxu0
        %v921 = vadd.f32 %v631, %v920
        %v922 = vpop.f32.mrb[0].mxu0
        %v923 = vadd.f32 %v627, %v922
        %v924 = vpop.f32.mrb[0].mxu0
        %v925 = vadd.f32 %v631, %v924
        %926 = vmatprep.mubr.bf16.mxu0 %v687
        %927 = vmatmul.mubr.bf16.gmra.mrb[0].mxu0 %v686
        %v928 = vpop.f32.mrb[0].mxu0
        %v929 = vadd.f32 %v627, %v928
        %v930 = vpop.f32.mrb[0].mxu0
        %v931 = vadd.f32 %v631, %v930
        %v932 = vpop.f32.mrb[0].mxu0
        %v933 = vadd.f32 %v627, %v932
        %v934 = vpop.f32.mrb[0].mxu0
        %v935 = vadd.f32 %v631, %v934
        %936 = vmatprep.mubr.bf16.mxu0 %v689
        %937 = vmatmul.mubr.bf16.gmra.mrb[0].mxu0 %v688
        %v938 = vpop.f32.mrb[0].mxu0
        %v939 = vadd.f32 %v627, %v938
        %v940 = vpop.f32.mrb[0].mxu0
        %v941 = vadd.f32 %v631, %v940
        %v942 = vpop.f32.mrb[0].mxu0
        %v943 = vadd.f32 %v627, %v942
        %v944 = vpop.f32.mrb[0].mxu0
        %v945 = vadd.f32 %v631, %v944
        %946 = vmatprep.mubr.bf16.mxu0 %v691
        %947 = vmatmul.mubr.bf16.gmra.mrb[0].mxu0 %v690
        %v948 = vpop.f32.mrb[0].mxu0
        %v949 = vadd.f32 %v627, %v948
        %v950 = vpop.f32.mrb[0].mxu0
        %v951 = vadd.f32 %v631, %v950
        %v952 = vpop.f32.mrb[0].mxu0
        %v953 = vadd.f32 %v627, %v952
        %v954 = vpop.f32.mrb[0].mxu0
        %v955 = vadd.f32 %v631, %v954
        %956 = vmatprep.mubr.bf16.mxu0 %v693
        %957 = vmatmul.mubr.bf16.gmra.mrb[0].mxu0 %v692
        %v958 = vpop.f32.mrb[0].mxu0
        %v959 = vadd.f32 %v627, %v958
        %v960 = vpop.f32.mrb[0].mxu0
        %v961 = vadd.f32 %v631, %v960
        %v962 = vpop.f32.mrb[0].mxu0
        %v963 = vadd.f32 %v627, %v962
        %v964 = vpop.f32.mrb[0].mxu0
        %v965 = vadd.f32 %v631, %v964
        %966 = vmatprep.mubr.bf16.mxu0 %v695
        %967 = vmatmul.mubr.bf16.gmra.mrb[0].mxu0 %v694
        %v968 = vpop.f32.mrb[0].mxu0
        %v969 = vadd.f32 %v627, %v968
        %v970 = vpop.f32.mrb[0].mxu0
        %v971 = vadd.f32 %v631, %v970
        %v972 = vpop.f32.mrb[0].mxu0
        %v973 = vadd.f32 %v627, %v972
        %v974 = vpop.f32.mrb[0].mxu0
        %v975 = vadd.f32 %v631, %v974
        %976 = vmatprep.mubr.bf16.mxu0 %v697
        %977 = vmatmul.mubr.bf16.gmra.mrb[0].mxu0 %v696
        %v978 = vpop.f32.mrb[0].mxu0
        %v979 = vadd.f32 %v627, %v978
        %v980 = vpop.f32.mrb[0].mxu0
        %v981 = vadd.f32 %v631, %v980
        %v982 = vpop.f32.mrb[0].mxu0
        %v983 = vadd.f32 %v627, %v982
        %v984 = vpop.f32.mrb[0].mxu0
        %v985 = vadd.f32 %v631, %v984
        %986 = vdwg.mxu0
        %v987 = vtanh.pop %v909
        %v988 = vtanh.pop %v911
        %v989 = vtanh.pop %v913
        %v990 = vtanh.pop %v915
        %v991 = vtanh.pop %v919
        %v992 = vtanh.pop %v921
        %v993 = vtanh.pop %v923
        %v994 = vtanh.pop %v925
        %v995 = vtanh.pop %v929
        %v996 = vtanh.pop %v931
        %v997 = vtanh.pop %v933
        %v998 = vtanh.pop %v935
        %v999 = vtanh.pop %v939
        %v1000 = vtanh.pop %v941
        %v1001 = vtanh.pop %v943
        %v1002 = vtanh.pop %v945
        %v1003 = vtanh.pop %v949
        %v1004 = vtanh.pop %v951
        %v1005 = vtanh.pop %v953
        %v1006 = vtanh.pop %v955
        %v1007 = vtanh.pop %v959
        %v1008 = vtanh.pop %v961
        %v1009 = vtanh.pop %v963
        %v1010 = vtanh.pop %v965
        %v1011 = vtanh.pop %v969
        %v1012 = vtanh.pop %v971
        %v1013 = vtanh.pop %v973
        %v1014 = vtanh.pop %v975
        %v1015 = vtanh.pop %v979
        %v1016 = vtanh.pop %v981
        %v1017 = vtanh.pop %v983
        %v1018 = vtanh.pop %v985
        %v1019 = vld [vmem:[%s491] sm:$0xff]
        %v1020 = vld [vmem:[%s491 + $0x8] sm:$0xff]
        %v1021 = vld [vmem:[%s491 + $0x10] sm:$0xff]
        %v1022 = vld [vmem:[%s491 + $0x18] sm:$0xff]
        %v1023 = vld [vmem:[%s491 + $0x20] sm:$0xff]
        %v1024 = vld [vmem:[%s491 + $0x28] sm:$0xff]
        %v1025 = vld [vmem:[%s491 + $0x30] sm:$0xff]
        %v1026 = vld [vmem:[%s491 + $0x38] sm:$0xff]
        %v1027 = vld [vmem:[%s491 + $0x40] sm:$0xff]
        %v1028 = vld [vmem:[%s491 + $0x48] sm:$0xff]
        %v1029 = vld [vmem:[%s491 + $0x50] sm:$0xff]
        %v1030 = vld [vmem:[%s491 + $0x58] sm:$0xff]
        %v1031 = vld [vmem:[%s491 + $0x60] sm:$0xff]
        %v1032 = vld [vmem:[%s491 + $0x68] sm:$0xff]
        %v1033 = vld [vmem:[%s491 + $0x70] sm:$0xff]
        %v1034 = vld [vmem:[%s491 + $0x78] sm:$0xff]
        %v1035 = vld [vmem:[#allocation11] sm:$0xff]
        %v1036 = vld [vmem:[#allocation11 + $0x8] sm:$0xff]
        %v1037 = vld [vmem:[#allocation11 + $0x10] sm:$0xff]
        %v1038 = vld [vmem:[#allocation11 + $0x18] sm:$0xff]
        %v1039 = vld [vmem:[#allocation11 + $0x20] sm:$0xff]
        %v1040 = vld [vmem:[#allocation11 + $0x28] sm:$0xff]
        %v1041 = vld [vmem:[#allocation11 + $0x30] sm:$0xff]
        %v1042 = vld [vmem:[#allocation11 + $0x38] sm:$0xff]
        %v1043 = vld [vmem:[#allocation11 + $0x40] sm:$0xff]
        %v1044 = vld [vmem:[#allocation11 + $0x48] sm:$0xff]
        %v1045 = vld [vmem:[#allocation11 + $0x50] sm:$0xff]
        %v1046 = vld [vmem:[#allocation11 + $0x58] sm:$0xff]
        %v1047 = vld [vmem:[#allocation11 + $0x60] sm:$0xff]
        %v1048 = vld [vmem:[#allocation11 + $0x68] sm:$0xff]
        %v1049 = vld [vmem:[#allocation11 + $0x70] sm:$0xff]
        %v1050 = vld [vmem:[#allocation11 + $0x78] sm:$0xff]
        %v1051 = vld [vmem:[#allocation11 + $0x80] sm:$0xff]
        %v1052 = vld [vmem:[#allocation11 + $0x88] sm:$0xff]
        %v1053 = vld [vmem:[#allocation11 + $0x90] sm:$0xff]
        %v1054 = vld [vmem:[#allocation11 + $0x98] sm:$0xff]
        %v1055 = vld [vmem:[#allocation11 + $0xa0] sm:$0xff]
        %v1056 = vld [vmem:[#allocation11 + $0xa8] sm:$0xff]
        %v1057 = vld [vmem:[#allocation11 + $0xb0] sm:$0xff]
        %v1058 = vld [vmem:[#allocation11 + $0xb8] sm:$0xff]
        %v1059 = vld [vmem:[#allocation11 + $0xc0] sm:$0xff]
        %v1060 = vld [vmem:[#allocation11 + $0xc8] sm:$0xff]
        %v1061 = vld [vmem:[#allocation11 + $0xd0] sm:$0xff]
        %v1062 = vld [vmem:[#allocation11 + $0xd8] sm:$0xff]
        %v1063 = vld [vmem:[#allocation11 + $0xe0] sm:$0xff]
        %v1064 = vld [vmem:[#allocation11 + $0xe8] sm:$0xff]
        %v1065 = vld [vmem:[#allocation11 + $0xf0] sm:$0xff]
        %v1066 = vld [vmem:[#allocation11 + $0xf8] sm:$0xff]
        %v1067 = vld [vmem:[%s6] sm:$0x3]
        %v1069 = vlaneseq
        %v1070 = vshrl.u32 %v1069, 7
        %v1071 = vsub.s32 0, %v1070
        %v1072 = vrot.slane %v1067, %v1071
        %v1073 = vlaneseq
        %v1074 = vshrl.u32 %v1073, 7
        %v1075 = vsub.s32 1, %v1074
        %v1076 = vrot.slane %v1067, %v1075
        %v1095 = vunpack.c.l.b16 %v1019
        %v1096 = vunpack.c.h.b16 %v1019
        %v1097 = vunpack.c.l.b16 %v1020
        %v1098 = vunpack.c.h.b16 %v1020
        %v1099 = vunpack.c.l.b16 %v1021
        %v1100 = vunpack.c.h.b16 %v1021
        %v1101 = vunpack.c.l.b16 %v1022
        %v1102 = vunpack.c.h.b16 %v1022
        %v1103 = vunpack.c.l.b16 %v1023
        %v1104 = vunpack.c.h.b16 %v1023
        %v1105 = vunpack.c.l.b16 %v1024
        %v1106 = vunpack.c.h.b16 %v1024
        %v1107 = vunpack.c.l.b16 %v1025
        %v1108 = vunpack.c.h.b16 %v1025
        %v1109 = vunpack.c.l.b16 %v1026
        %v1110 = vunpack.c.h.b16 %v1026
        %v1111 = vunpack.c.l.b16 %v1027
        %v1112 = vunpack.c.h.b16 %v1027
        %v1113 = vunpack.c.l.b16 %v1028
        %v1114 = vunpack.c.h.b16 %v1028
        %v1115 = vunpack.c.l.b16 %v1029
        %v1116 = vunpack.c.h.b16 %v1029
        %v1117 = vunpack.c.l.b16 %v1030
        %v1118 = vunpack.c.h.b16 %v1030
        %v1119 = vunpack.c.l.b16 %v1031
        %v1120 = vunpack.c.h.b16 %v1031
        %v1121 = vunpack.c.l.b16 %v1032
        %v1122 = vunpack.c.h.b16 %v1032
        %v1123 = vunpack.c.l.b16 %v1033
        %v1124 = vunpack.c.h.b16 %v1033
        %v1125 = vunpack.c.l.b16 %v1034
        %v1126 = vunpack.c.h.b16 %v1034
        %v1127 = vpack.c.b16 %v1097, %v1095
        %v1128 = vpack.c.b16 %v1098, %v1096
        %v1129 = vpack.c.b16 %v1101, %v1099
        %v1130 = vpack.c.b16 %v1102, %v1100
        %v1131 = vpack.c.b16 %v1105, %v1103
        %v1132 = vpack.c.b16 %v1106, %v1104
        %v1133 = vpack.c.b16 %v1109, %v1107
        %v1134 = vpack.c.b16 %v1110, %v1108
        %v1135 = vpack.c.b16 %v1113, %v1111
        %v1136 = vpack.c.b16 %v1114, %v1112
        %v1137 = vpack.c.b16 %v1117, %v1115
        %v1138 = vpack.c.b16 %v1118, %v1116
        %v1139 = vpack.c.b16 %v1121, %v1119
        %v1140 = vpack.c.b16 %v1122, %v1120
        %v1141 = vpack.c.b16 %v1125, %v1123
        %v1142 = vpack.c.b16 %v1126, %v1124
        %v1191 = vunpack.c.l.b16 %v1035
        %v1192 = vunpack.c.h.b16 %v1035
        %v1193 = vunpack.c.l.b16 %v1036
        %v1194 = vunpack.c.h.b16 %v1036
        %v1195 = vunpack.c.l.b16 %v1037
        %v1196 = vunpack.c.h.b16 %v1037
        %v1197 = vunpack.c.l.b16 %v1038
        %v1198 = vunpack.c.h.b16 %v1038
        %v1199 = vunpack.c.l.b16 %v1039
        %v1200 = vunpack.c.h.b16 %v1039
        %v1201 = vunpack.c.l.b16 %v1040
        %v1202 = vunpack.c.h.b16 %v1040
        %v1203 = vunpack.c.l.b16 %v1041
        %v1204 = vunpack.c.h.b16 %v1041
        %v1205 = vunpack.c.l.b16 %v1042
        %v1206 = vunpack.c.h.b16 %v1042
        %v1207 = vunpack.c.l.b16 %v1043
        %v1208 = vunpack.c.h.b16 %v1043
        %v1209 = vunpack.c.l.b16 %v1044
        %v1210 = vunpack.c.h.b16 %v1044
        %v1211 = vunpack.c.l.b16 %v1045
        %v1212 = vunpack.c.h.b16 %v1045
        %v1213 = vunpack.c.l.b16 %v1046
        %v1214 = vunpack.c.h.b16 %v1046
        %v1215 = vunpack.c.l.b16 %v1047
        %v1216 = vunpack.c.h.b16 %v1047
        %v1217 = vunpack.c.l.b16 %v1048
        %v1218 = vunpack.c.h.b16 %v1048
        %v1219 = vunpack.c.l.b16 %v1049
        %v1220 = vunpack.c.h.b16 %v1049
        %v1221 = vunpack.c.l.b16 %v1050
        %v1222 = vunpack.c.h.b16 %v1050
        %v1223 = vunpack.c.l.b16 %v1051
        %v1224 = vunpack.c.h.b16 %v1051
        %v1225 = vunpack.c.l.b16 %v1052
        %v1226 = vunpack.c.h.b16 %v1052
        %v1227 = vunpack.c.l.b16 %v1053
        %v1228 = vunpack.c.h.b16 %v1053
        %v1229 = vunpack.c.l.b16 %v1054
        %v1230 = vunpack.c.h.b16 %v1054
        %v1231 = vunpack.c.l.b16 %v1055
        %v1232 = vunpack.c.h.b16 %v1055
        %v1233 = vunpack.c.l.b16 %v1056
        %v1234 = vunpack.c.h.b16 %v1056
        %v1235 = vunpack.c.l.b16 %v1057
        %v1236 = vunpack.c.h.b16 %v1057
        %v1237 = vunpack.c.l.b16 %v1058
        %v1238 = vunpack.c.h.b16 %v1058
        %v1239 = vunpack.c.l.b16 %v1059
        %v1240 = vunpack.c.h.b16 %v1059
        %v1241 = vunpack.c.l.b16 %v1060
        %v1242 = vunpack.c.h.b16 %v1060
        %v1243 = vunpack.c.l.b16 %v1061
        %v1244 = vunpack.c.h.b16 %v1061
        %v1245 = vunpack.c.l.b16 %v1062
        %v1246 = vunpack.c.h.b16 %v1062
        %v1247 = vunpack.c.l.b16 %v1063
        %v1248 = vunpack.c.h.b16 %v1063
        %v1249 = vunpack.c.l.b16 %v1064
        %v1250 = vunpack.c.h.b16 %v1064
        %v1251 = vunpack.c.l.b16 %v1065
        %v1252 = vunpack.c.h.b16 %v1065
        %v1253 = vunpack.c.l.b16 %v1066
        %v1254 = vunpack.c.h.b16 %v1066
        %v1255 = vpack.c.b16 %v1193, %v1191
        %v1256 = vpack.c.b16 %v1194, %v1192
        %v1257 = vpack.c.b16 %v1197, %v1195
        %v1258 = vpack.c.b16 %v1198, %v1196
        %v1259 = vpack.c.b16 %v1201, %v1199
        %v1260 = vpack.c.b16 %v1202, %v1200
        %v1261 = vpack.c.b16 %v1205, %v1203
        %v1262 = vpack.c.b16 %v1206, %v1204
        %v1263 = vpack.c.b16 %v1209, %v1207
        %v1264 = vpack.c.b16 %v1210, %v1208
        %v1265 = vpack.c.b16 %v1213, %v1211
        %v1266 = vpack.c.b16 %v1214, %v1212
        %v1267 = vpack.c.b16 %v1217, %v1215
        %v1268 = vpack.c.b16 %v1218, %v1216
        %v1269 = vpack.c.b16 %v1221, %v1219
        %v1270 = vpack.c.b16 %v1222, %v1220
        %v1271 = vpack.c.b16 %v1225, %v1223
        %v1272 = vpack.c.b16 %v1226, %v1224
        %v1273 = vpack.c.b16 %v1229, %v1227
        %v1274 = vpack.c.b16 %v1230, %v1228
        %v1275 = vpack.c.b16 %v1233, %v1231
        %v1276 = vpack.c.b16 %v1234, %v1232
        %v1277 = vpack.c.b16 %v1237, %v1235
        %v1278 = vpack.c.b16 %v1238, %v1236
        %v1279 = vpack.c.b16 %v1241, %v1239
        %v1280 = vpack.c.b16 %v1242, %v1240
        %v1281 = vpack.c.b16 %v1245, %v1243
        %v1282 = vpack.c.b16 %v1246, %v1244
        %v1283 = vpack.c.b16 %v1249, %v1247
        %v1284 = vpack.c.b16 %v1250, %v1248
        %v1285 = vpack.c.b16 %v1253, %v1251
        %v1286 = vpack.c.b16 %v1254, %v1252
        %1319 = vmatprep.subr.bf16.mxu0 %v1256
        %1320 = vmatpush1.bf16.msra.mxu0 %v1255
        %1321 = vmatprep.subr.bf16.mxu0 %v1258
        %1322 = vmatpush1.bf16.msra.mxu0 %v1257
        %1323 = vmatprep.subr.bf16.mxu0 %v1260
        %1324 = vmatpush1.bf16.msra.mxu0 %v1259
        %1325 = vmatprep.subr.bf16.mxu0 %v1262
        %1326 = vmatpush1.bf16.msra.mxu0 %v1261
        %1327 = vmatprep.subr.bf16.mxu0 %v1264
        %1328 = vmatpush1.bf16.msra.mxu0 %v1263
        %1329 = vmatprep.subr.bf16.mxu0 %v1266
        %1330 = vmatpush1.bf16.msra.mxu0 %v1265
        %1331 = vmatprep.subr.bf16.mxu0 %v1268
        %1332 = vmatpush1.bf16.msra.mxu0 %v1267
        %1333 = vmatprep.subr.bf16.mxu0 %v1270
        %1334 = vmatpush1.bf16.msra.mxu0 %v1269
        %1335 = vmatprep.subr.bf16.mxu0 %v1272
        %1336 = vmatpush1.bf16.msra.mxu0 %v1271
        %1337 = vmatprep.subr.bf16.mxu0 %v1274
        %1338 = vmatpush1.bf16.msra.mxu0 %v1273
        %1339 = vmatprep.subr.bf16.mxu0 %v1276
        %1340 = vmatpush1.bf16.msra.mxu0 %v1275
        %1341 = vmatprep.subr.bf16.mxu0 %v1278
        %1342 = vmatpush1.bf16.msra.mxu0 %v1277
        %1343 = vmatprep.subr.bf16.mxu0 %v1280
        %1344 = vmatpush1.bf16.msra.mxu0 %v1279
        %1345 = vmatprep.subr.bf16.mxu0 %v1282
        %1346 = vmatpush1.bf16.msra.mxu0 %v1281
        %1347 = vmatprep.subr.bf16.mxu0 %v1284
        %1348 = vmatpush1.bf16.msra.mxu0 %v1283
        %1349 = vmatprep.subr.bf16.mxu0 %v1286
        %1350 = vmatpush1.bf16.msra.mxu0 %v1285
        %1351 = vmatprep.mubr.bf16.mxu0 %v1128
        %1352 = vmatmul.mubr.bf16.gmra.mrb[0].mxu0 %v1127
        %v1353 = vpop.f32.mrb[0].mxu0
        %v1354 = vadd.f32 %v1072, %v1353
        %v1355 = vpop.f32.mrb[0].mxu0
        %v1356 = vadd.f32 %v1076, %v1355
        %v1357 = vpop.f32.mrb[0].mxu0
        %v1358 = vadd.f32 %v1072, %v1357
        %v1359 = vpop.f32.mrb[0].mxu0
        %v1360 = vadd.f32 %v1076, %v1359
        %1361 = vmatprep.mubr.bf16.mxu0 %v1130
        %1362 = vmatmul.mubr.bf16.gmra.mrb[0].mxu0 %v1129
        %v1363 = vpop.f32.mrb[0].mxu0
        %v1364 = vadd.f32 %v1072, %v1363
        %v1365 = vpop.f32.mrb[0].mxu0
        %v1366 = vadd.f32 %v1076, %v1365
        %v1367 = vpop.f32.mrb[0].mxu0
        %v1368 = vadd.f32 %v1072, %v1367
        %v1369 = vpop.f32.mrb[0].mxu0
        %v1370 = vadd.f32 %v1076, %v1369
        %1371 = vmatprep.mubr.bf16.mxu0 %v1132
        %1372 = vmatmul.mubr.bf16.gmra.mrb[0].mxu0 %v1131
        %v1373 = vpop.f32.mrb[0].mxu0
        %v1374 = vadd.f32 %v1072, %v1373
        %v1375 = vpop.f32.mrb[0].mxu0
        %v1376 = vadd.f32 %v1076, %v1375
        %v1377 = vpop.f32.mrb[0].mxu0
        %v1378 = vadd.f32 %v1072, %v1377
        %v1379 = vpop.f32.mrb[0].mxu0
        %v1380 = vadd.f32 %v1076, %v1379
        %1381 = vmatprep.mubr.bf16.mxu0 %v1134
        %1382 = vmatmul.mubr.bf16.gmra.mrb[0].mxu0 %v1133
        %v1383 = vpop.f32.mrb[0].mxu0
        %v1384 = vadd.f32 %v1072, %v1383
        %v1385 = vpop.f32.mrb[0].mxu0
        %v1386 = vadd.f32 %v1076, %v1385
        %v1387 = vpop.f32.mrb[0].mxu0
        %v1388 = vadd.f32 %v1072, %v1387
        %v1389 = vpop.f32.mrb[0].mxu0
        %v1390 = vadd.f32 %v1076, %v1389
        %1391 = vmatprep.mubr.bf16.mxu0 %v1136
        %1392 = vmatmul.mubr.bf16.gmra.mrb[0].mxu0 %v1135
        %v1393 = vpop.f32.mrb[0].mxu0
        %v1394 = vadd.f32 %v1072, %v1393
        %v1395 = vpop.f32.mrb[0].mxu0
        %v1396 = vadd.f32 %v1076, %v1395
        %v1397 = vpop.f32.mrb[0].mxu0
        %v1398 = vadd.f32 %v1072, %v1397
        %v1399 = vpop.f32.mrb[0].mxu0
        %v1400 = vadd.f32 %v1076, %v1399
        %1401 = vmatprep.mubr.bf16.mxu0 %v1138
        %1402 = vmatmul.mubr.bf16.gmra.mrb[0].mxu0 %v1137
        %v1403 = vpop.f32.mrb[0].mxu0
        %v1404 = vadd.f32 %v1072, %v1403
        %v1405 = vpop.f32.mrb[0].mxu0
        %v1406 = vadd.f32 %v1076, %v1405
        %v1407 = vpop.f32.mrb[0].mxu0
        %v1408 = vadd.f32 %v1072, %v1407
        %v1409 = vpop.f32.mrb[0].mxu0
        %v1410 = vadd.f32 %v1076, %v1409
        %1411 = vmatprep.mubr.bf16.mxu0 %v1140
        %1412 = vmatmul.mubr.bf16.gmra.mrb[0].mxu0 %v1139
        %v1413 = vpop.f32.mrb[0].mxu0
        %v1414 = vadd.f32 %v1072, %v1413
        %v1415 = vpop.f32.mrb[0].mxu0
        %v1416 = vadd.f32 %v1076, %v1415
        %v1417 = vpop.f32.mrb[0].mxu0
        %v1418 = vadd.f32 %v1072, %v1417
        %v1419 = vpop.f32.mrb[0].mxu0
        %v1420 = vadd.f32 %v1076, %v1419
        %1421 = vmatprep.mubr.bf16.mxu0 %v1142
        %1422 = vmatmul.mubr.bf16.gmra.mrb[0].mxu0 %v1141
        %v1423 = vpop.f32.mrb[0].mxu0
        %v1424 = vadd.f32 %v1072, %v1423
        %v1425 = vpop.f32.mrb[0].mxu0
        %v1426 = vadd.f32 %v1076, %v1425
        %v1427 = vpop.f32.mrb[0].mxu0
        %v1428 = vadd.f32 %v1072, %v1427
        %v1429 = vpop.f32.mrb[0].mxu0
        %v1430 = vadd.f32 %v1076, %v1429
        %1431 = vdwg.mxu0
        %v1432 = vxor.u32 %v1354, 2147483648
        %v1433 = vxor.u32 %v1356, 2147483648
        %v1434 = vxor.u32 %v1358, 2147483648
        %v1435 = vxor.u32 %v1360, 2147483648
        %v1436 = vxor.u32 %v1364, 2147483648
        %v1437 = vxor.u32 %v1366, 2147483648
        %v1438 = vxor.u32 %v1368, 2147483648
        %v1439 = vxor.u32 %v1370, 2147483648
        %v1440 = vxor.u32 %v1374, 2147483648
        %v1441 = vxor.u32 %v1376, 2147483648
        %v1442 = vxor.u32 %v1378, 2147483648
        %v1443 = vxor.u32 %v1380, 2147483648
        %v1444 = vxor.u32 %v1384, 2147483648
        %v1445 = vxor.u32 %v1386, 2147483648
        %v1446 = vxor.u32 %v1388, 2147483648
        %v1447 = vxor.u32 %v1390, 2147483648
        %v1448 = vxor.u32 %v1394, 2147483648
        %v1449 = vxor.u32 %v1396, 2147483648
        %v1450 = vxor.u32 %v1398, 2147483648
        %v1451 = vxor.u32 %v1400, 2147483648
        %v1452 = vxor.u32 %v1404, 2147483648
        %v1453 = vxor.u32 %v1406, 2147483648
        %v1454 = vxor.u32 %v1408, 2147483648
        %v1455 = vxor.u32 %v1410, 2147483648
        %v1456 = vxor.u32 %v1414, 2147483648
        %v1457 = vxor.u32 %v1416, 2147483648
        %v1458 = vxor.u32 %v1418, 2147483648
        %v1459 = vxor.u32 %v1420, 2147483648
        %v1460 = vxor.u32 %v1424, 2147483648
        %v1461 = vxor.u32 %v1426, 2147483648
        %v1462 = vxor.u32 %v1428, 2147483648
        %v1463 = vxor.u32 %v1430, 2147483648
        %v1464 = vmul.f32 %v1432, 1.442695
        %v1465 = vpow.pop %v1464
        %v1466 = vmul.f32 %v1433, 1.442695
        %v1467 = vpow.pop %v1466
        %v1468 = vmul.f32 %v1434, 1.442695
        %v1469 = vpow.pop %v1468
        %v1470 = vmul.f32 %v1435, 1.442695
        %v1471 = vpow.pop %v1470
        %v1472 = vmul.f32 %v1436, 1.442695
        %v1473 = vpow.pop %v1472
        %v1474 = vmul.f32 %v1437, 1.442695
        %v1475 = vpow.pop %v1474
        %v1476 = vmul.f32 %v1438, 1.442695
        %v1477 = vpow.pop %v1476
        %v1478 = vmul.f32 %v1439, 1.442695
        %v1479 = vpow.pop %v1478
        %v1480 = vmul.f32 %v1440, 1.442695
        %v1481 = vpow.pop %v1480
        %v1482 = vmul.f32 %v1441, 1.442695
        %v1483 = vpow.pop %v1482
        %v1484 = vmul.f32 %v1442, 1.442695
        %v1485 = vpow.pop %v1484
        %v1486 = vmul.f32 %v1443, 1.442695
        %v1487 = vpow.pop %v1486
        %v1488 = vmul.f32 %v1444, 1.442695
        %v1489 = vpow.pop %v1488
        %v1490 = vmul.f32 %v1445, 1.442695
        %v1491 = vpow.pop %v1490
        %v1492 = vmul.f32 %v1446, 1.442695
        %v1493 = vpow.pop %v1492
        %v1494 = vmul.f32 %v1447, 1.442695
        %v1495 = vpow.pop %v1494
        %v1496 = vmul.f32 %v1448, 1.442695
        %v1497 = vpow.pop %v1496
        %v1498 = vmul.f32 %v1449, 1.442695
        %v1499 = vpow.pop %v1498
        %v1500 = vmul.f32 %v1450, 1.442695
        %v1501 = vpow.pop %v1500
        %v1502 = vmul.f32 %v1451, 1.442695
        %v1503 = vpow.pop %v1502
        %v1504 = vmul.f32 %v1452, 1.442695
        %v1505 = vpow.pop %v1504
        %v1506 = vmul.f32 %v1453, 1.442695
        %v1507 = vpow.pop %v1506
        %v1508 = vmul.f32 %v1454, 1.442695
        %v1509 = vpow.pop %v1508
        %v1510 = vmul.f32 %v1455, 1.442695
        %v1511 = vpow.pop %v1510
        %v1512 = vmul.f32 %v1456, 1.442695
        %v1513 = vpow.pop %v1512
        %v1514 = vmul.f32 %v1457, 1.442695
        %v1515 = vpow.pop %v1514
        %v1516 = vmul.f32 %v1458, 1.442695
        %v1517 = vpow.pop %v1516
        %v1518 = vmul.f32 %v1459, 1.442695
        %v1519 = vpow.pop %v1518
        %v1520 = vmul.f32 %v1460, 1.442695
        %v1521 = vpow.pop %v1520
        %v1522 = vmul.f32 %v1461, 1.442695
        %v1523 = vpow.pop %v1522
        %v1524 = vmul.f32 %v1462, 1.442695
        %v1525 = vpow.pop %v1524
        %v1526 = vmul.f32 %v1463, 1.442695
        %v1527 = vpow.pop %v1526
        %v1528 = vadd.f32 %v1465, 1.0
        %v1529 = vadd.f32 %v1467, 1.0
        %v1530 = vadd.f32 %v1469, 1.0
        %v1531 = vadd.f32 %v1471, 1.0
        %v1532 = vadd.f32 %v1473, 1.0
        %v1533 = vadd.f32 %v1475, 1.0
        %v1534 = vadd.f32 %v1477, 1.0
        %v1535 = vadd.f32 %v1479, 1.0
        %v1536 = vadd.f32 %v1481, 1.0
        %v1537 = vadd.f32 %v1483, 1.0
        %v1538 = vadd.f32 %v1485, 1.0
        %v1539 = vadd.f32 %v1487, 1.0
        %v1540 = vadd.f32 %v1489, 1.0
        %v1541 = vadd.f32 %v1491, 1.0
        %v1542 = vadd.f32 %v1493, 1.0
        %v1543 = vadd.f32 %v1495, 1.0
        %v1544 = vadd.f32 %v1497, 1.0
        %v1545 = vadd.f32 %v1499, 1.0
        %v1546 = vadd.f32 %v1501, 1.0
        %v1547 = vadd.f32 %v1503, 1.0
        %v1548 = vadd.f32 %v1505, 1.0
        %v1549 = vadd.f32 %v1507, 1.0
        %v1550 = vadd.f32 %v1509, 1.0
        %v1551 = vadd.f32 %v1511, 1.0
        %v1552 = vadd.f32 %v1513, 1.0
        %v1553 = vadd.f32 %v1515, 1.0
        %v1554 = vadd.f32 %v1517, 1.0
        %v1555 = vadd.f32 %v1519, 1.0
        %v1556 = vadd.f32 %v1521, 1.0
        %v1557 = vadd.f32 %v1523, 1.0
        %v1558 = vadd.f32 %v1525, 1.0
        %v1559 = vadd.f32 %v1527, 1.0
        %v1560 = vrcp.pop %v1528
        %v1561 = vmul.f32 1.0, %v1560
        %v1562 = vrcp.pop %v1529
        %v1563 = vmul.f32 1.0, %v1562
        %v1564 = vrcp.pop %v1530
        %v1565 = vmul.f32 1.0, %v1564
        %v1566 = vrcp.pop %v1531
        %v1567 = vmul.f32 1.0, %v1566
        %v1568 = vrcp.pop %v1532
        %v1569 = vmul.f32 1.0, %v1568
        %v1570 = vrcp.pop %v1533
        %v1571 = vmul.f32 1.0, %v1570
        %v1572 = vrcp.pop %v1534
        %v1573 = vmul.f32 1.0, %v1572
        %v1574 = vrcp.pop %v1535
        %v1575 = vmul.f32 1.0, %v1574
        %v1576 = vrcp.pop %v1536
        %v1577 = vmul.f32 1.0, %v1576
        %v1578 = vrcp.pop %v1537
        %v1579 = vmul.f32 1.0, %v1578
        %v1580 = vrcp.pop %v1538
        %v1581 = vmul.f32 1.0, %v1580
        %v1582 = vrcp.pop %v1539
        %v1583 = vmul.f32 1.0, %v1582
        %v1584 = vrcp.pop %v1540
        %v1585 = vmul.f32 1.0, %v1584
        %v1586 = vrcp.pop %v1541
        %v1587 = vmul.f32 1.0, %v1586
        %v1588 = vrcp.pop %v1542
        %v1589 = vmul.f32 1.0, %v1588
        %v1590 = vrcp.pop %v1543
        %v1591 = vmul.f32 1.0, %v1590
        %v1592 = vrcp.pop %v1544
        %v1593 = vmul.f32 1.0, %v1592
        %v1594 = vrcp.pop %v1545
        %v1595 = vmul.f32 1.0, %v1594
        %v1596 = vrcp.pop %v1546
        %v1597 = vmul.f32 1.0, %v1596
        %v1598 = vrcp.pop %v1547
        %v1599 = vmul.f32 1.0, %v1598
        %v1600 = vrcp.pop %v1548
        %v1601 = vmul.f32 1.0, %v1600
        %v1602 = vrcp.pop %v1549
        %v1603 = vmul.f32 1.0, %v1602
        %v1604 = vrcp.pop %v1550
        %v1605 = vmul.f32 1.0, %v1604
        %v1606 = vrcp.pop %v1551
        %v1607 = vmul.f32 1.0, %v1606
        %v1608 = vrcp.pop %v1552
        %v1609 = vmul.f32 1.0, %v1608
        %v1610 = vrcp.pop %v1553
        %v1611 = vmul.f32 1.0, %v1610
        %v1612 = vrcp.pop %v1554
        %v1613 = vmul.f32 1.0, %v1612
        %v1614 = vrcp.pop %v1555
        %v1615 = vmul.f32 1.0, %v1614
        %v1616 = vrcp.pop %v1556
        %v1617 = vmul.f32 1.0, %v1616
        %v1618 = vrcp.pop %v1557
        %v1619 = vmul.f32 1.0, %v1618
        %v1620 = vrcp.pop %v1558
        %v1621 = vmul.f32 1.0, %v1620
        %v1622 = vrcp.pop %v1559
        %v1623 = vmul.f32 1.0, %v1622
        %v1624 = vmul.f32 %v987, %v1561
        %v1625 = vmul.f32 %v988, %v1563
        %v1626 = vmul.f32 %v989, %v1565
        %v1627 = vmul.f32 %v990, %v1567
        %v1628 = vmul.f32 %v991, %v1569
        %v1629 = vmul.f32 %v992, %v1571
        %v1630 = vmul.f32 %v993, %v1573
        %v1631 = vmul.f32 %v994, %v1575
        %v1632 = vmul.f32 %v995, %v1577
        %v1633 = vmul.f32 %v996, %v1579
        %v1634 = vmul.f32 %v997, %v1581
        %v1635 = vmul.f32 %v998, %v1583
        %v1636 = vmul.f32 %v999, %v1585
        %v1637 = vmul.f32 %v1000, %v1587
        %v1638 = vmul.f32 %v1001, %v1589
        %v1639 = vmul.f32 %v1002, %v1591
        %v1640 = vmul.f32 %v1003, %v1593
        %v1641 = vmul.f32 %v1004, %v1595
        %v1642 = vmul.f32 %v1005, %v1597
        %v1643 = vmul.f32 %v1006, %v1599
        %v1644 = vmul.f32 %v1007, %v1601
        %v1645 = vmul.f32 %v1008, %v1603
        %v1646 = vmul.f32 %v1009, %v1605
        %v1647 = vmul.f32 %v1010, %v1607
        %v1648 = vmul.f32 %v1011, %v1609
        %v1649 = vmul.f32 %v1012, %v1611
        %v1650 = vmul.f32 %v1013, %v1613
        %v1651 = vmul.f32 %v1014, %v1615
        %v1652 = vmul.f32 %v1015, %v1617
        %v1653 = vmul.f32 %v1016, %v1619
        %v1654 = vmul.f32 %v1017, %v1621
        %v1655 = vmul.f32 %v1018, %v1623
        %v1656 = vld [vmem:[%s500] sm:$0xf]
        %v1657 = vld [vmem:[%s500 + $0x4] sm:$0xf]
        %v1658 = vld [vmem:[%s500 + $0x8] sm:$0xf]
        %v1659 = vld [vmem:[%s500 + $0xc] sm:$0xf]
        %v1660 = vld [vmem:[%s500 + $0x10] sm:$0xf]
        %v1661 = vld [vmem:[%s500 + $0x14] sm:$0xf]
        %v1662 = vld [vmem:[%s500 + $0x18] sm:$0xf]
        %v1663 = vld [vmem:[%s500 + $0x1c] sm:$0xf]
        %v1664 = vld [vmem:[%s500 + $0x20] sm:$0xf]
        %v1665 = vld [vmem:[%s500 + $0x24] sm:$0xf]
        %v1666 = vld [vmem:[%s500 + $0x28] sm:$0xf]
        %v1667 = vld [vmem:[%s500 + $0x2c] sm:$0xf]
        %v1668 = vld [vmem:[%s500 + $0x30] sm:$0xf]
        %v1669 = vld [vmem:[%s500 + $0x34] sm:$0xf]
        %v1670 = vld [vmem:[%s500 + $0x38] sm:$0xf]
        %v1671 = vld [vmem:[%s500 + $0x3c] sm:$0xf]
        %v1672 = vld [vmem:[#allocation12] sm:$0xff]
        %v1673 = vld [vmem:[#allocation12 + $0x8] sm:$0xff]
        %v1674 = vld [vmem:[#allocation12 + $0x10] sm:$0xff]
        %v1675 = vld [vmem:[#allocation12 + $0x18] sm:$0xff]
        %v1676 = vld [vmem:[#allocation12 + $0x20] sm:$0xff]
        %v1677 = vld [vmem:[#allocation12 + $0x28] sm:$0xff]
        %v1678 = vld [vmem:[#allocation12 + $0x30] sm:$0xff]
        %v1679 = vld [vmem:[#allocation12 + $0x38] sm:$0xff]
        %v1680 = vld [vmem:[#allocation12 + $0x40] sm:$0xff]
        %v1681 = vld [vmem:[#allocation12 + $0x48] sm:$0xff]
        %v1682 = vld [vmem:[#allocation12 + $0x50] sm:$0xff]
        %v1683 = vld [vmem:[#allocation12 + $0x58] sm:$0xff]
        %v1684 = vld [vmem:[#allocation12 + $0x60] sm:$0xff]
        %v1685 = vld [vmem:[#allocation12 + $0x68] sm:$0xff]
        %v1686 = vld [vmem:[#allocation12 + $0x70] sm:$0xff]
        %v1687 = vld [vmem:[#allocation12 + $0x78] sm:$0xff]
        %v1688 = vld [vmem:[%s8] sm:$0x3]
        %v1690 = vlaneseq
        %v1691 = vshrl.u32 %v1690, 7
        %v1692 = vsub.s32 0, %v1691
        %v1693 = vrot.slane %v1688, %v1692
        %v1694 = vlaneseq
        %v1695 = vshrl.u32 %v1694, 7
        %v1696 = vsub.s32 1, %v1695
        %v1697 = vrot.slane %v1688, %v1696
        %v1716 = vunpack.c.l.b16 %v1656
        %v1717 = vunpack.c.l.b16 %v1657
        %v1718 = vunpack.c.l.b16 %v1658
        %v1719 = vunpack.c.l.b16 %v1659
        %v1720 = vunpack.c.l.b16 %v1660
        %v1721 = vunpack.c.l.b16 %v1661
        %v1722 = vunpack.c.l.b16 %v1662
        %v1723 = vunpack.c.l.b16 %v1663
        %v1724 = vunpack.c.l.b16 %v1664
        %v1725 = vunpack.c.l.b16 %v1665
        %v1726 = vunpack.c.l.b16 %v1666
        %v1727 = vunpack.c.l.b16 %v1667
        %v1728 = vunpack.c.l.b16 %v1668
        %v1729 = vunpack.c.l.b16 %v1669
        %v1730 = vunpack.c.l.b16 %v1670
        %v1731 = vunpack.c.l.b16 %v1671
        %v1732 = vpack.c.b16 %v1717, %v1716
        %v1733 = vpack.c.b16 %v1719, %v1718
        %v1734 = vpack.c.b16 %v1721, %v1720
        %v1735 = vpack.c.b16 %v1723, %v1722
        %v1736 = vpack.c.b16 %v1725, %v1724
        %v1737 = vpack.c.b16 %v1727, %v1726
        %v1738 = vpack.c.b16 %v1729, %v1728
        %v1739 = vpack.c.b16 %v1731, %v1730
        %v1764 = vunpack.c.l.b16 %v1672
        %v1765 = vunpack.c.h.b16 %v1672
        %v1766 = vunpack.c.l.b16 %v1673
        %v1767 = vunpack.c.h.b16 %v1673
        %v1768 = vunpack.c.l.b16 %v1674
        %v1769 = vunpack.c.h.b16 %v1674
        %v1770 = vunpack.c.l.b16 %v1675
        %v1771 = vunpack.c.h.b16 %v1675
        %v1772 = vunpack.c.l.b16 %v1676
        %v1773 = vunpack.c.h.b16 %v1676
        %v1774 = vunpack.c.l.b16 %v1677
        %v1775 = vunpack.c.h.b16 %v1677
        %v1776 = vunpack.c.l.b16 %v1678
        %v1777 = vunpack.c.h.b16 %v1678
        %v1778 = vunpack.c.l.b16 %v1679
        %v1779 = vunpack.c.h.b16 %v1679
        %v1780 = vunpack.c.l.b16 %v1680
        %v1781 = vunpack.c.h.b16 %v1680
        %v1782 = vunpack.c.l.b16 %v1681
        %v1783 = vunpack.c.h.b16 %v1681
        %v1784 = vunpack.c.l.b16 %v1682
        %v1785 = vunpack.c.h.b16 %v1682
        %v1786 = vunpack.c.l.b16 %v1683
        %v1787 = vunpack.c.h.b16 %v1683
        %v1788 = vunpack.c.l.b16 %v1684
        %v1789 = vunpack.c.h.b16 %v1684
        %v1790 = vunpack.c.l.b16 %v1685
        %v1791 = vunpack.c.h.b16 %v1685
        %v1792 = vunpack.c.l.b16 %v1686
        %v1793 = vunpack.c.h.b16 %v1686
        %v1794 = vunpack.c.l.b16 %v1687
        %v1795 = vunpack.c.h.b16 %v1687
        %v1796 = vpack.c.b16 %v1766, %v1764
        %v1797 = vpack.c.b16 %v1767, %v1765
        %v1798 = vpack.c.b16 %v1770, %v1768
        %v1799 = vpack.c.b16 %v1771, %v1769
        %v1800 = vpack.c.b16 %v1774, %v1772
        %v1801 = vpack.c.b16 %v1775, %v1773
        %v1802 = vpack.c.b16 %v1778, %v1776
        %v1803 = vpack.c.b16 %v1779, %v1777
        %v1804 = vpack.c.b16 %v1782, %v1780
        %v1805 = vpack.c.b16 %v1783, %v1781
        %v1806 = vpack.c.b16 %v1786, %v1784
        %v1807 = vpack.c.b16 %v1787, %v1785
        %v1808 = vpack.c.b16 %v1790, %v1788
        %v1809 = vpack.c.b16 %v1791, %v1789
        %v1810 = vpack.c.b16 %v1794, %v1792
        %v1811 = vpack.c.b16 %v1795, %v1793
        %1828 = vmatprep.subr.bf16.mxu0 %v1797
        %1829 = vmatpush1.bf16.msra.mxu0 %v1796
        %1830 = vmatprep.subr.bf16.mxu0 %v1799
        %1831 = vmatpush1.bf16.msra.mxu0 %v1798
        %1832 = vmatprep.subr.bf16.mxu0 %v1801
        %1833 = vmatpush1.bf16.msra.mxu0 %v1800
        %1834 = vmatprep.subr.bf16.mxu0 %v1803
        %1835 = vmatpush1.bf16.msra.mxu0 %v1802
        %1836 = vmatprep.subr.bf16.mxu0 %v1805
        %1837 = vmatpush1.bf16.msra.mxu0 %v1804
        %1838 = vmatprep.subr.bf16.mxu0 %v1807
        %1839 = vmatpush1.bf16.msra.mxu0 %v1806
        %1840 = vmatprep.subr.bf16.mxu0 %v1809
        %1841 = vmatpush1.bf16.msra.mxu0 %v1808
        %1842 = vmatprep.subr.bf16.mxu0 %v1811
        %1843 = vmatpush1.bf16.msra.mxu0 %v1810
        %1844 = vmatprep.subr.bf16.mxu0 0
        %1845 = vmatpush1.bf16.msra.mxu0 0
        %1846 = vmatprep.subr.bf16.mxu0 0
        %1847 = vmatpush1.bf16.msra.mxu0 0
        %1848 = vmatprep.subr.bf16.mxu0 0
        %1849 = vmatpush1.bf16.msra.mxu0 0
        %1850 = vmatprep.subr.bf16.mxu0 0
        %1851 = vmatpush1.bf16.msra.mxu0 0
        %1852 = vmatprep.subr.bf16.mxu0 0
        %1853 = vmatpush1.bf16.msra.mxu0 0
        %1854 = vmatprep.subr.bf16.mxu0 0
        %1855 = vmatpush1.bf16.msra.mxu0 0
        %1856 = vmatprep.subr.bf16.mxu0 0
        %1857 = vmatpush1.bf16.msra.mxu0 0
        %1858 = vmatprep.subr.bf16.mxu0 0
        %1859 = vmatpush1.bf16.msra.mxu0 0
        %1860 = vmatprep.mubr.bf16.mxu0 0
        %1861 = vmatmul.mubr.bf16.gmra.mrb[0].mxu0 %v1732
        %v1862 = vpop.f32.mrb[0].mxu0
        %v1863 = vadd.f32 %v1693, %v1862
        %v1864 = vpop.f32.mrb[0].mxu0
        %v1865 = vadd.f32 %v1697, %v1864
        %v1866 = vpop.f32.mrb[0].mxu0
        %v1867 = vadd.f32 %v1693, %v1866
        %v1868 = vpop.f32.mrb[0].mxu0
        %v1869 = vadd.f32 %v1697, %v1868
        %1870 = vmatprep.mubr.bf16.mxu0 0
        %1871 = vmatmul.mubr.bf16.gmra.mrb[0].mxu0 %v1733
        %v1872 = vpop.f32.mrb[0].mxu0
        %v1873 = vadd.f32 %v1693, %v1872
        %v1874 = vpop.f32.mrb[0].mxu0
        %v1875 = vadd.f32 %v1697, %v1874
        %v1876 = vpop.f32.mrb[0].mxu0
        %v1877 = vadd.f32 %v1693, %v1876
        %v1878 = vpop.f32.mrb[0].mxu0
        %v1879 = vadd.f32 %v1697, %v1878
        %1880 = vmatprep.mubr.bf16.mxu0 0
        %1881 = vmatmul.mubr.bf16.gmra.mrb[0].mxu0 %v1734
        %v1882 = vpop.f32.mrb[0].mxu0
        %v1883 = vadd.f32 %v1693, %v1882
        %v1884 = vpop.f32.mrb[0].mxu0
        %v1885 = vadd.f32 %v1697, %v1884
        %v1886 = vpop.f32.mrb[0].mxu0
        %v1887 = vadd.f32 %v1693, %v1886
        %v1888 = vpop.f32.mrb[0].mxu0
        %v1889 = vadd.f32 %v1697, %v1888
        %1890 = vmatprep.mubr.bf16.mxu0 0
        %1891 = vmatmul.mubr.bf16.gmra.mrb[0].mxu0 %v1735
        %v1892 = vpop.f32.mrb[0].mxu0
        %v1893 = vadd.f32 %v1693, %v1892
        %v1894 = vpop.f32.mrb[0].mxu0
        %v1895 = vadd.f32 %v1697, %v1894
        %v1896 = vpop.f32.mrb[0].mxu0
        %v1897 = vadd.f32 %v1693, %v1896
        %v1898 = vpop.f32.mrb[0].mxu0
        %v1899 = vadd.f32 %v1697, %v1898
        %1900 = vmatprep.mubr.bf16.mxu0 0
        %1901 = vmatmul.mubr.bf16.gmra.mrb[0].mxu0 %v1736
        %v1902 = vpop.f32.mrb[0].mxu0
        %v1903 = vadd.f32 %v1693, %v1902
        %v1904 = vpop.f32.mrb[0].mxu0
        %v1905 = vadd.f32 %v1697, %v1904
        %v1906 = vpop.f32.mrb[0].mxu0
        %v1907 = vadd.f32 %v1693, %v1906
        %v1908 = vpop.f32.mrb[0].mxu0
        %v1909 = vadd.f32 %v1697, %v1908
        %1910 = vmatprep.mubr.bf16.mxu0 0
        %1911 = vmatmul.mubr.bf16.gmra.mrb[0].mxu0 %v1737
        %v1912 = vpop.f32.mrb[0].mxu0
        %v1913 = vadd.f32 %v1693, %v1912
        %v1914 = vpop.f32.mrb[0].mxu0
        %v1915 = vadd.f32 %v1697, %v1914
        %v1916 = vpop.f32.mrb[0].mxu0
        %v1917 = vadd.f32 %v1693, %v1916
        %v1918 = vpop.f32.mrb[0].mxu0
        %v1919 = vadd.f32 %v1697, %v1918
        %1920 = vmatprep.mubr.bf16.mxu0 0
        %1921 = vmatmul.mubr.bf16.gmra.mrb[0].mxu0 %v1738
        %v1922 = vpop.f32.mrb[0].mxu0
        %v1923 = vadd.f32 %v1693, %v1922
        %v1924 = vpop.f32.mrb[0].mxu0
        %v1925 = vadd.f32 %v1697, %v1924
        %v1926 = vpop.f32.mrb[0].mxu0
        %v1927 = vadd.f32 %v1693, %v1926
        %v1928 = vpop.f32.mrb[0].mxu0
        %v1929 = vadd.f32 %v1697, %v1928
        %1930 = vmatprep.mubr.bf16.mxu0 0
        %1931 = vmatmul.mubr.bf16.gmra.mrb[0].mxu0 %v1739
        %v1932 = vpop.f32.mrb[0].mxu0
        %v1933 = vadd.f32 %v1693, %v1932
        %v1934 = vpop.f32.mrb[0].mxu0
        %v1935 = vadd.f32 %v1697, %v1934
        %v1936 = vpop.f32.mrb[0].mxu0
        %v1937 = vadd.f32 %v1693, %v1936
        %v1938 = vpop.f32.mrb[0].mxu0
        %v1939 = vadd.f32 %v1697, %v1938
        %1940 = vdwg.mxu0
        %v1941 = vmax.f32 %v1863, 0.0
        %v1942 = vmax.f32 %v1865, 0.0
        %v1943 = vmax.f32 %v1867, 0.0
        %v1944 = vmax.f32 %v1869, 0.0
        %v1945 = vmax.f32 %v1873, 0.0
        %v1946 = vmax.f32 %v1875, 0.0
        %v1947 = vmax.f32 %v1877, 0.0
        %v1948 = vmax.f32 %v1879, 0.0
        %v1949 = vmax.f32 %v1883, 0.0
        %v1950 = vmax.f32 %v1885, 0.0
        %v1951 = vmax.f32 %v1887, 0.0
        %v1952 = vmax.f32 %v1889, 0.0
        %v1953 = vmax.f32 %v1893, 0.0
        %v1954 = vmax.f32 %v1895, 0.0
        %v1955 = vmax.f32 %v1897, 0.0
        %v1956 = vmax.f32 %v1899, 0.0
        %v1957 = vmax.f32 %v1903, 0.0
        %v1958 = vmax.f32 %v1905, 0.0
        %v1959 = vmax.f32 %v1907, 0.0
        %v1960 = vmax.f32 %v1909, 0.0
        %v1961 = vmax.f32 %v1913, 0.0
        %v1962 = vmax.f32 %v1915, 0.0
        %v1963 = vmax.f32 %v1917, 0.0
        %v1964 = vmax.f32 %v1919, 0.0
        %v1965 = vmax.f32 %v1923, 0.0
        %v1966 = vmax.f32 %v1925, 0.0
        %v1967 = vmax.f32 %v1927, 0.0
        %v1968 = vmax.f32 %v1929, 0.0
        %v1969 = vmax.f32 %v1933, 0.0
        %v1970 = vmax.f32 %v1935, 0.0
        %v1971 = vmax.f32 %v1937, 0.0
        %v1972 = vmax.f32 %v1939, 0.0
        %v1973 = vmul.f32 %v1624, %v1941
        %v1974 = vmul.f32 %v1625, %v1942
        %v1975 = vmul.f32 %v1626, %v1943
        %v1976 = vmul.f32 %v1627, %v1944
        %v1977 = vmul.f32 %v1628, %v1945
        %v1978 = vmul.f32 %v1629, %v1946
        %v1979 = vmul.f32 %v1630, %v1947
        %v1980 = vmul.f32 %v1631, %v1948
        %v1981 = vmul.f32 %v1632, %v1949
        %v1982 = vmul.f32 %v1633, %v1950
        %v1983 = vmul.f32 %v1634, %v1951
        %v1984 = vmul.f32 %v1635, %v1952
        %v1985 = vmul.f32 %v1636, %v1953
        %v1986 = vmul.f32 %v1637, %v1954
        %v1987 = vmul.f32 %v1638, %v1955
        %v1988 = vmul.f32 %v1639, %v1956
        %v1989 = vmul.f32 %v1640, %v1957
        %v1990 = vmul.f32 %v1641, %v1958
        %v1991 = vmul.f32 %v1642, %v1959
        %v1992 = vmul.f32 %v1643, %v1960
        %v1993 = vmul.f32 %v1644, %v1961
        %v1994 = vmul.f32 %v1645, %v1962
        %v1995 = vmul.f32 %v1646, %v1963
        %v1996 = vmul.f32 %v1647, %v1964
        %v1997 = vmul.f32 %v1648, %v1965
        %v1998 = vmul.f32 %v1649, %v1966
        %v1999 = vmul.f32 %v1650, %v1967
        %v2000 = vmul.f32 %v1651, %v1968
        %v2001 = vmul.f32 %v1652, %v1969
        %v2002 = vmul.f32 %v1653, %v1970
        %v2003 = vmul.f32 %v1654, %v1971
        %v2004 = vmul.f32 %v1655, %v1972
        %v2005 = vld [vmem:[%s9] sm:$0x3]
        %v2007 = vlaneseq
        %v2008 = vshrl.u32 %v2007, 7
        %v2009 = vsub.s32 0, %v2008
        %v2010 = vrot.slane %v2005, %v2009
        %v2011 = vlaneseq
        %v2012 = vshrl.u32 %v2011, 7
        %v2013 = vsub.s32 1, %v2012
        %v2014 = vrot.slane %v2005, %v2013
        %v2017 = vmul.f32 %v1973, %v2010
        %v2018 = vmul.f32 %v1974, %v2014
        %v2019 = vmul.f32 %v1975, %v2010
        %v2020 = vmul.f32 %v1976, %v2014
        %v2021 = vmul.f32 %v1977, %v2010
        %v2022 = vmul.f32 %v1978, %v2014
        %v2023 = vmul.f32 %v1979, %v2010
        %v2024 = vmul.f32 %v1980, %v2014
        %v2025 = vmul.f32 %v1981, %v2010
        %v2026 = vmul.f32 %v1982, %v2014
        %v2027 = vmul.f32 %v1983, %v2010
        %v2028 = vmul.f32 %v1984, %v2014
        %v2029 = vmul.f32 %v1985, %v2010
        %v2030 = vmul.f32 %v1986, %v2014
        %v2031 = vmul.f32 %v1987, %v2010
        %v2032 = vmul.f32 %v1988, %v2014
        %v2033 = vmul.f32 %v1989, %v2010
        %v2034 = vmul.f32 %v1990, %v2014
        %v2035 = vmul.f32 %v1991, %v2010
        %v2036 = vmul.f32 %v1992, %v2014
        %v2037 = vmul.f32 %v1993, %v2010
        %v2038 = vmul.f32 %v1994, %v2014
        %v2039 = vmul.f32 %v1995, %v2010
        %v2040 = vmul.f32 %v1996, %v2014
        %v2041 = vmul.f32 %v1997, %v2010
        %v2042 = vmul.f32 %v1998, %v2014
        %v2043 = vmul.f32 %v1999, %v2010
        %v2044 = vmul.f32 %v2000, %v2014
        %v2045 = vmul.f32 %v2001, %v2010
        %v2046 = vmul.f32 %v2002, %v2014
        %v2047 = vmul.f32 %v2003, %v2010
        %v2048 = vmul.f32 %v2004, %v2014
        %v2049 = vadd.f32 %v2017, %v2018
        %2050 = vadd.xlane.f32.xlu0 %v2049
        %v2051 = vpop.xlane.xlu0 %2050
        %v2052 = vadd.f32 %v2019, %v2020
        %2053 = vadd.xlane.f32.xlu0 %v2052
        %v2054 = vpop.xlane.xlu0 %2053
        %v2055 = vadd.f32 %v2021, %v2022
        %2056 = vadd.xlane.f32.xlu0 %v2055
        %v2057 = vpop.xlane.xlu0 %2056
        %v2058 = vadd.f32 %v2023, %v2024
        %2059 = vadd.xlane.f32.xlu0 %v2058
        %v2060 = vpop.xlane.xlu0 %2059
        %v2061 = vadd.f32 %v2025, %v2026
        %2062 = vadd.xlane.f32.xlu0 %v2061
        %v2063 = vpop.xlane.xlu0 %2062
        %v2064 = vadd.f32 %v2027, %v2028
        %2065 = vadd.xlane.f32.xlu0 %v2064
        %v2066 = vpop.xlane.xlu0 %2065
        %v2067 = vadd.f32 %v2029, %v2030
        %2068 = vadd.xlane.f32.xlu0 %v2067
        %v2069 = vpop.xlane.xlu0 %2068
        %v2070 = vadd.f32 %v2031, %v2032
        %2071 = vadd.xlane.f32.xlu0 %v2070
        %v2072 = vpop.xlane.xlu0 %2071
        %v2073 = vadd.f32 %v2033, %v2034
        %2074 = vadd.xlane.f32.xlu0 %v2073
        %v2075 = vpop.xlane.xlu0 %2074
        %v2076 = vadd.f32 %v2035, %v2036
        %2077 = vadd.xlane.f32.xlu0 %v2076
        %v2078 = vpop.xlane.xlu0 %2077
        %v2079 = vadd.f32 %v2037, %v2038
        %2080 = vadd.xlane.f32.xlu0 %v2079
        %v2081 = vpop.xlane.xlu0 %2080
        %v2082 = vadd.f32 %v2039, %v2040
        %2083 = vadd.xlane.f32.xlu0 %v2082
        %v2084 = vpop.xlane.xlu0 %2083
        %v2085 = vadd.f32 %v2041, %v2042
        %2086 = vadd.xlane.f32.xlu0 %v2085
        %v2087 = vpop.xlane.xlu0 %2086
        %v2088 = vadd.f32 %v2043, %v2044
        %2089 = vadd.xlane.f32.xlu0 %v2088
        %v2090 = vpop.xlane.xlu0 %2089
        %v2091 = vadd.f32 %v2045, %v2046
        %2092 = vadd.xlane.f32.xlu0 %v2091
        %v2093 = vpop.xlane.xlu0 %2092
        %v2094 = vadd.f32 %v2047, %v2048
        %2095 = vadd.xlane.f32.xlu0 %v2094
        %v2096 = vpop.xlane.xlu0 %2095
        %v2097 = vld [vmem:[#allocation2] sm:$0x1]
        %v2099 = vlaneseq
        %v2100 = vshrl.u32 %v2099, 7
        %v2101 = vsub.s32 0, %v2100
        %v2102 = vrot.slane %v2097, %v2101
        %v2104 = vadd.f32 %v2051, %v2102
        %v2105 = vadd.f32 %v2054, %v2102
        %v2106 = vadd.f32 %v2057, %v2102
        %v2107 = vadd.f32 %v2060, %v2102
        %v2108 = vadd.f32 %v2063, %v2102
        %v2109 = vadd.f32 %v2066, %v2102
        %v2110 = vadd.f32 %v2069, %v2102
        %v2111 = vadd.f32 %v2072, %v2102
        %v2112 = vadd.f32 %v2075, %v2102
        %v2113 = vadd.f32 %v2078, %v2102
        %v2114 = vadd.f32 %v2081, %v2102
        %v2115 = vadd.f32 %v2084, %v2102
        %v2116 = vadd.f32 %v2087, %v2102
        %v2117 = vadd.f32 %v2090, %v2102
        %v2118 = vadd.f32 %v2093, %v2102
        %v2119 = vadd.f32 %v2096, %v2102
        %v2120 = vsub.f32 %v2104, %v2104
        %v2121 = vsub.f32 %v2105, %v2105
        %v2122 = vsub.f32 %v2106, %v2106
        %v2123 = vsub.f32 %v2107, %v2107
        %v2124 = vsub.f32 %v2108, %v2108
        %v2125 = vsub.f32 %v2109, %v2109
        %v2126 = vsub.f32 %v2110, %v2110
        %v2127 = vsub.f32 %v2111, %v2111
        %v2128 = vsub.f32 %v2112, %v2112
        %v2129 = vsub.f32 %v2113, %v2113
        %v2130 = vsub.f32 %v2114, %v2114
        %v2131 = vsub.f32 %v2115, %v2115
        %v2132 = vsub.f32 %v2116, %v2116
        %v2133 = vsub.f32 %v2117, %v2117
        %v2134 = vsub.f32 %v2118, %v2118
        %v2135 = vsub.f32 %v2119, %v2119
        %v2136 = vmul.f32 %v2120, 1.442695
        %v2137 = vpow.pop %v2136
        %v2138 = vmul.f32 %v2121, 1.442695
        %v2139 = vpow.pop %v2138
        %v2140 = vmul.f32 %v2122, 1.442695
        %v2141 = vpow.pop %v2140
        %v2142 = vmul.f32 %v2123, 1.442695
        %v2143 = vpow.pop %v2142
        %v2144 = vmul.f32 %v2124, 1.442695
        %v2145 = vpow.pop %v2144
        %v2146 = vmul.f32 %v2125, 1.442695
        %v2147 = vpow.pop %v2146
        %v2148 = vmul.f32 %v2126, 1.442695
        %v2149 = vpow.pop %v2148
        %v2150 = vmul.f32 %v2127, 1.442695
        %v2151 = vpow.pop %v2150
        %v2152 = vmul.f32 %v2128, 1.442695
        %v2153 = vpow.pop %v2152
        %v2154 = vmul.f32 %v2129, 1.442695
        %v2155 = vpow.pop %v2154
        %v2156 = vmul.f32 %v2130, 1.442695
        %v2157 = vpow.pop %v2156
        %v2158 = vmul.f32 %v2131, 1.442695
        %v2159 = vpow.pop %v2158
        %v2160 = vmul.f32 %v2132, 1.442695
        %v2161 = vpow.pop %v2160
        %v2162 = vmul.f32 %v2133, 1.442695
        %v2163 = vpow.pop %v2162
        %v2164 = vmul.f32 %v2134, 1.442695
        %v2165 = vpow.pop %v2164
        %v2166 = vmul.f32 %v2135, 1.442695
        %v2167 = vpow.pop %v2166
        %v2168 = vadd.f32 %v2137, 0.0
        %v2169 = vadd.f32 %v2139, 0.0
        %v2170 = vadd.f32 %v2141, 0.0
        %v2171 = vadd.f32 %v2143, 0.0
        %v2172 = vadd.f32 %v2145, 0.0
        %v2173 = vadd.f32 %v2147, 0.0
        %v2174 = vadd.f32 %v2149, 0.0
        %v2175 = vadd.f32 %v2151, 0.0
        %v2176 = vadd.f32 %v2153, 0.0
        %v2177 = vadd.f32 %v2155, 0.0
        %v2178 = vadd.f32 %v2157, 0.0
        %v2179 = vadd.f32 %v2159, 0.0
        %v2180 = vadd.f32 %v2161, 0.0
        %v2181 = vadd.f32 %v2163, 0.0
        %v2182 = vadd.f32 %v2165, 0.0
        %v2183 = vadd.f32 %v2167, 0.0
        %v2184 = vrcp.pop %v2168
        %v2185 = vmul.f32 %v2137, %v2184
        %v2186 = vrcp.pop %v2169
        %v2187 = vmul.f32 %v2139, %v2186
        %v2188 = vrcp.pop %v2170
        %v2189 = vmul.f32 %v2141, %v2188
        %v2190 = vrcp.pop %v2171
        %v2191 = vmul.f32 %v2143, %v2190
        %v2192 = vrcp.pop %v2172
        %v2193 = vmul.f32 %v2145, %v2192
        %v2194 = vrcp.pop %v2173
        %v2195 = vmul.f32 %v2147, %v2194
        %v2196 = vrcp.pop %v2174
        %v2197 = vmul.f32 %v2149, %v2196
        %v2198 = vrcp.pop %v2175
        %v2199 = vmul.f32 %v2151, %v2198
        %v2200 = vrcp.pop %v2176
        %v2201 = vmul.f32 %v2153, %v2200
        %v2202 = vrcp.pop %v2177
        %v2203 = vmul.f32 %v2155, %v2202
        %v2204 = vrcp.pop %v2178
        %v2205 = vmul.f32 %v2157, %v2204
        %v2206 = vrcp.pop %v2179
        %v2207 = vmul.f32 %v2159, %v2206
        %v2208 = vrcp.pop %v2180
        %v2209 = vmul.f32 %v2161, %v2208
        %v2210 = vrcp.pop %v2181
        %v2211 = vmul.f32 %v2163, %v2210
        %v2212 = vrcp.pop %v2182
        %v2213 = vmul.f32 %v2165, %v2212
        %v2214 = vrcp.pop %v2183
        %v2215 = vmul.f32 %v2167, %v2214
        %2217 = vset.pattern.permute.xlu0 0
        %2218 = vperm.xlu0 %2217, %v2185
        %v2219 = vpop.permute.xlu0 %2218
        %2222 = vset.pattern.permute.xlu0 0
        %2223 = vperm.xlu0 %2222, %v2187
        %v2224 = vpop.permute.xlu0 %2223
        %2227 = vset.pattern.permute.xlu0 0
        %2228 = vperm.xlu0 %2227, %v2189
        %v2229 = vpop.permute.xlu0 %2228
        %2232 = vset.pattern.permute.xlu0 0
        %2233 = vperm.xlu0 %2232, %v2191
        %v2234 = vpop.permute.xlu0 %2233
        %2237 = vset.pattern.permute.xlu0 0
        %2238 = vperm.xlu0 %2237, %v2193
        %v2239 = vpop.permute.xlu0 %2238
        %2242 = vset.pattern.permute.xlu0 0
        %2243 = vperm.xlu0 %2242, %v2195
        %v2244 = vpop.permute.xlu0 %2243
        %2247 = vset.pattern.permute.xlu0 0
        %2248 = vperm.xlu0 %2247, %v2197
        %v2249 = vpop.permute.xlu0 %2248
        %2252 = vset.pattern.permute.xlu0 0
        %2253 = vperm.xlu0 %2252, %v2199
        %v2254 = vpop.permute.xlu0 %2253
        %2257 = vset.pattern.permute.xlu0 0
        %2258 = vperm.xlu0 %2257, %v2201
        %v2259 = vpop.permute.xlu0 %2258
        %2262 = vset.pattern.permute.xlu0 0
        %2263 = vperm.xlu0 %2262, %v2203
        %v2264 = vpop.permute.xlu0 %2263
        %2267 = vset.pattern.permute.xlu0 0
        %2268 = vperm.xlu0 %2267, %v2205
        %v2269 = vpop.permute.xlu0 %2268
        %2272 = vset.pattern.permute.xlu0 0
        %2273 = vperm.xlu0 %2272, %v2207
        %v2274 = vpop.permute.xlu0 %2273
        %2277 = vset.pattern.permute.xlu0 0
        %2278 = vperm.xlu0 %2277, %v2209
        %v2279 = vpop.permute.xlu0 %2278
        %2282 = vset.pattern.permute.xlu0 0
        %2283 = vperm.xlu0 %2282, %v2211
        %v2284 = vpop.permute.xlu0 %2283
        %2287 = vset.pattern.permute.xlu0 0
        %2288 = vperm.xlu0 %2287, %v2213
        %v2289 = vpop.permute.xlu0 %2288
        %2292 = vset.pattern.permute.xlu0 0
        %2293 = vperm.xlu0 %2292, %v2215
        %v2294 = vpop.permute.xlu0 %2293
        %2296 = vst [vmem:[%s560] sm:$0xff] %v2219
        %2297 = vst [vmem:[%s560 + $0x8] sm:$0xff] %v2224
        %2298 = vst [vmem:[%s560 + $0x10] sm:$0xff] %v2229
        %2299 = vst [vmem:[%s560 + $0x18] sm:$0xff] %v2234
        %2300 = vst [vmem:[%s560 + $0x20] sm:$0xff] %v2239
        %2301 = vst [vmem:[%s560 + $0x28] sm:$0xff] %v2244
        %2302 = vst [vmem:[%s560 + $0x30] sm:$0xff] %v2249
        %2303 = vst [vmem:[%s560 + $0x38] sm:$0xff] %v2254
        %2304 = vst [vmem:[%s560 + $0x40] sm:$0xff] %v2259
        %2305 = vst [vmem:[%s560 + $0x48] sm:$0xff] %v2264
        %2306 = vst [vmem:[%s560 + $0x50] sm:$0xff] %v2269
        %2307 = vst [vmem:[%s560 + $0x58] sm:$0xff] %v2274
        %2308 = vst [vmem:[%s560 + $0x60] sm:$0xff] %v2279
        %2309 = vst [vmem:[%s560 + $0x68] sm:$0xff] %v2284
        %2310 = vst [vmem:[%s560 + $0x70] sm:$0xff] %v2289
        %2311 = vst [vmem:[%s560 + $0x78] sm:$0xff] %v2294
        %2313 = vset.pattern.permute.xlu0 0
        %2314 = vperm.xlu0 %2313, %v2104
        %v2315 = vpop.permute.xlu0 %2314
        %2318 = vset.pattern.permute.xlu0 0
        %2319 = vperm.xlu0 %2318, %v2105
        %v2320 = vpop.permute.xlu0 %2319
        %2323 = vset.pattern.permute.xlu0 0
        %2324 = vperm.xlu0 %2323, %v2106
        %v2325 = vpop.permute.xlu0 %2324
        %2328 = vset.pattern.permute.xlu0 0
        %2329 = vperm.xlu0 %2328, %v2107
        %v2330 = vpop.permute.xlu0 %2329
        %2333 = vset.pattern.permute.xlu0 0
        %2334 = vperm.xlu0 %2333, %v2108
        %v2335 = vpop.permute.xlu0 %2334
        %2338 = vset.pattern.permute.xlu0 0
        %2339 = vperm.xlu0 %2338, %v2109
        %v2340 = vpop.permute.xlu0 %2339
        %2343 = vset.pattern.permute.xlu0 0
        %2344 = vperm.xlu0 %2343, %v2110
        %v2345 = vpop.permute.xlu0 %2344
        %2348 = vset.pattern.permute.xlu0 0
        %2349 = vperm.xlu0 %2348, %v2111
        %v2350 = vpop.permute.xlu0 %2349
        %2353 = vset.pattern.permute.xlu0 0
        %2354 = vperm.xlu0 %2353, %v2112
        %v2355 = vpop.permute.xlu0 %2354
        %2358 = vset.pattern.permute.xlu0 0
        %2359 = vperm.xlu0 %2358, %v2113
        %v2360 = vpop.permute.xlu0 %2359
        %2363 = vset.pattern.permute.xlu0 0
        %2364 = vperm.xlu0 %2363, %v2114
        %v2365 = vpop.permute.xlu0 %2364
        %2368 = vset.pattern.permute.xlu0 0
        %2369 = vperm.xlu0 %2368, %v2115
        %v2370 = vpop.permute.xlu0 %2369
        %2373 = vset.pattern.permute.xlu0 0
        %2374 = vperm.xlu0 %2373, %v2116
        %v2375 = vpop.permute.xlu0 %2374
        %2378 = vset.pattern.permute.xlu0 0
        %2379 = vperm.xlu0 %2378, %v2117
        %v2380 = vpop.permute.xlu0 %2379
        %2383 = vset.pattern.permute.xlu0 0
        %2384 = vperm.xlu0 %2383, %v2118
        %v2385 = vpop.permute.xlu0 %2384
        %2388 = vset.pattern.permute.xlu0 0
        %2389 = vperm.xlu0 %2388, %v2119
        %v2390 = vpop.permute.xlu0 %2389
        %2392 = vst [vmem:[%s567] sm:$0xff] %v2315
        %2393 = vst [vmem:[%s567 + $0x8] sm:$0xff] %v2320
        %2394 = vst [vmem:[%s567 + $0x10] sm:$0xff] %v2325
        %2395 = vst [vmem:[%s567 + $0x18] sm:$0xff] %v2330
        %2396 = vst [vmem:[%s567 + $0x20] sm:$0xff] %v2335
        %2397 = vst [vmem:[%s567 + $0x28] sm:$0xff] %v2340
        %2398 = vst [vmem:[%s567 + $0x30] sm:$0xff] %v2345
        %2399 = vst [vmem:[%s567 + $0x38] sm:$0xff] %v2350
        %2400 = vst [vmem:[%s567 + $0x40] sm:$0xff] %v2355
        %2401 = vst [vmem:[%s567 + $0x48] sm:$0xff] %v2360
        %2402 = vst [vmem:[%s567 + $0x50] sm:$0xff] %v2365
        %2403 = vst [vmem:[%s567 + $0x58] sm:$0xff] %v2370
        %2404 = vst [vmem:[%s567 + $0x60] sm:$0xff] %v2375
        %2405 = vst [vmem:[%s567 + $0x68] sm:$0xff] %v2380
        %2406 = vst [vmem:[%s567 + $0x70] sm:$0xff] %v2385
        %2407 = vst [vmem:[%s567 + $0x78] sm:$0xff] %v2390
        %s2408 = sand.u32 %s294, 1
        %s2409 = scalar_lea.sflag [#allocation5], %s2408
        %s2410 = sand.u32 %s294, 1
        %s2411 = smul.addr %s2410, 128
        %s2412 = scalar_lea.vmem [#allocation14], %s2411
        %s2413 = sand.u32 %s320, 1
        %s2414 = scalar_lea.sflag [#allocation16], %s2413
        %s2415 = sand.u32 %s320, 1
        %s2416 = smul.addr %s2415, 128
        %s2417 = scalar_lea.vmem [#allocation15], %s2416
        // Predicated region
        $region89: #{tpu_custom_call.1} parent=63 // pred_check
          %p2418 = pneg %p304
        $region90: #{tpu_custom_call.1} parent=63 // pred_check_branch
          %2420 = sbr.rel (%p2418) target = $region92
        $region91: #{tpu_custom_call.1} parent=63 // pred_region
          %s2421 = smul.u32 16, %s40
          %s2423 = ssub.s32 2048, 2048
          %2424 = vsyncadd %s2409, %s2423
          %s2425 = smul.addr %s2421, 128
          %s2426 = scalar_lea.hbm %s11, %s2425
          %s2427 = sshll.u32 %s2412, 4
          %s2428 = int_to_ptr.vmem [resolvable:$true] %s2427
          %2433 = dma.vmem_to_hbm [thread:$0]  %s2428, 2048, %s2426, %s2409, 128, 128, 8
        $region92: #{tpu_custom_call.1} parent=63 // pred_fallthru
          _
        // Predicated region
        $region93: #{tpu_custom_call.1} parent=63 // pred_check
          %p2434 = pneg %p330
        $region94: #{tpu_custom_call.1} parent=63 // pred_check_branch
          %2436 = sbr.rel (%p2434) target = $region96
        $region95: #{tpu_custom_call.1} parent=63 // pred_region
          %s2437 = smul.u32 16, %s40
          %s2439 = ssub.s32 2048, 2048
          %2440 = vsyncadd %s2414, %s2439
          %s2441 = smul.addr %s2437, 128
          %s2442 = scalar_lea.hbm %s12, %s2441
          %s2443 = sshll.u32 %s2417, 4
          %s2444 = int_to_ptr.vmem [resolvable:$true] %s2443
          %2449 = dma.vmem_to_hbm [thread:$0]  %s2444, 2048, %s2442, %s2414, 128, 128, 8
        $region96: #{tpu_custom_call.1} parent=63 // pred_fallthru
          _
      $region64: #{tpu_custom_call.1} parent=5 // pred_fallthru
        _
      %p2450 = scmp.le.s32.totalorder 2, %s35
      // Predicated region
      $region97: #{tpu_custom_call.1} parent=5 // pred_check
        %p2451 = pneg %p2450
      $region98: #{tpu_custom_call.1} parent=5 // pred_check_branch
        %2453 = sbr.rel (%p2451) target = $region100
      $region99: #{tpu_custom_call.1} parent=5 // pred_region
        %s2454 = ssub.s32 %s35, 2
        // Predicated region
        $region101: #{tpu_custom_call.1} parent=99 // pred_check
          %p2455 = pneg %p310
        $region102: #{tpu_custom_call.1} parent=99 // pred_check_branch
          %2457 = sbr.rel (%p2455) target = $region104
        $region103: #{tpu_custom_call.1} parent=99 // pred_region
          %s2458 = sand.u32 %s295, 1
          %s2459 = scalar_lea.sflag [#allocation5], %s2458
          %s2460 = sand.u32 %s295, 1
          %s2461 = smul.addr %s2460, 128
          %s2462 = scalar_lea.vmem [#allocation14], %s2461
          %2463 = dma.done %s2459, 2048
        $region104: #{tpu_custom_call.1} parent=99 // pred_fallthru
          _
        // Predicated region
        $region105: #{tpu_custom_call.1} parent=99 // pred_check
          %p2464 = pneg %p336
        $region106: #{tpu_custom_call.1} parent=99 // pred_check_branch
          %2466 = sbr.rel (%p2464) target = $region108
        $region107: #{tpu_custom_call.1} parent=99 // pred_region
          %s2467 = sand.u32 %s321, 1
          %s2468 = scalar_lea.sflag [#allocation16], %s2467
          %s2469 = sand.u32 %s321, 1
          %s2470 = smul.addr %s2469, 128
          %s2471 = scalar_lea.vmem [#allocation15], %s2470
          %2472 = dma.done %s2468, 2048
        $region108: #{tpu_custom_call.1} parent=99 // pred_fallthru
          _
      $region100: #{tpu_custom_call.1} parent=5 // pred_fallthru
        _
    $region6: #{tpu_custom_call.1} parent=1 // loop_footer
      %s39 = sadd.s32 1, %s35
    $region7: #{tpu_custom_call.1} parent=1 // loop_footer_branch
      %34 = sbr.rel target = $region3
    $region8: #{tpu_custom_call.1} parent=1 // loop_exit
      _
    %2473 = vsyncpa [#allocation4], 1
    %s2474 = scalar_lea.sflag [#allocation4], 1
    %2475 = vsyncpa %s2474, 1
    %2476 = vsyncpa [#allocation7], 1
    %s2477 = scalar_lea.sflag [#allocation7], 1
    %2478 = vsyncpa %s2477, 1
    %2479 = vsyncpa [#allocation10], 1
    %2480 = vsyncpa [#allocation13], 1
    %2481 = vsyncpa [#allocation5], 1
    %s2482 = scalar_lea.sflag [#allocation5], 1
    %2483 = vsyncpa %s2482, 1
    %2484 = vsyncpa [#allocation16], 1
    %s2485 = scalar_lea.sflag [#allocation16], 1
    %2486 = vsyncpa %s2485, 1

</llo_original>
